<compile_context>
chip_gen: v5e
topology: v5e:2x2
jax: 0.10.0
libtpu: 0.0.40
codegen_flags: <defaults>
</compile_context>

<pallas_src>
import jax
import jax.numpy as jnp
from jax import lax
from jax.experimental import pallas as pl
from jax.experimental.pallas import tpu as pltpu

HIDDEN = 63      # LSTM hidden size of the PyTorch module
HP = 64          # padded hidden size used inside the kernel
IN_DIM = 3       # LSTM input size
FC_DIM = 64      # fc2 width (63 hidden + 1 scalar y)
G = 2 * HP       # combined (actor|critic) per-gate lane width = 128
OUT_PAD = 128    # lane-dense padded output (actor -> lanes 0:2, critic -> lane 2)

# PyTorch LSTM gate order is (i, f, g, o); the kernel packs gates as (i, f, o, g) so the
# three sigmoid gates are contiguous lanes.  slot -> pytorch gate index:
GATE_ORDER = (0, 1, 3, 2)


def _actor_critic_kernel(x_ref, y_ref, wih_ref, wmat_ref, vec_ref, out_ref):
    """Fused, batched actor+critic forward, fully resident in VMEM.

    x_ref:    (T*B, 3)   bf16   time-major input sequences (shared by both heads)
    y_ref:    (B, 1)     f32    per-sequence scalar feature concatenated after the LSTM
    wih_ref:  (3, 4*G)   bf16   fused input->gate weights   [gates i|f|o|g; per gate actor|critic]
    wmat_ref: (128, 768) bf16   [ whh (128,512) | w2 (128,128) | w3 (128,128) ], block-diag per head
    vec_ref:  (1, 896)   f32    [ bg (512) | w2y (128) | b2 (128) | b3 (128) ]
    out_ref:  (B, 128)   f32    actor mean in lanes 0:2, critic value in lane 2
    """
    TB = x_ref.shape[0]
    B = y_ref.shape[0]
    T = TB // B

    # Static, lane-aligned slices of the coalesced weight slabs (read once, loop-invariant).
    whh = wmat_ref[:, 0:4 * G]                                   # (128, 512) bf16
    w2 = wmat_ref[:, 4 * G:4 * G + 2 * FC_DIM]                   # (128, 128) bf16
    w3 = wmat_ref[:, 4 * G + 2 * FC_DIM:4 * G + 4 * FC_DIM]      # (128, 128) bf16
    bg = vec_ref[:, 0:4 * G]                                     # (1, 512) f32
    w2y = vec_ref[:, 4 * G:4 * G + 2 * FC_DIM]                   # (1, 128) f32
    b2 = vec_ref[:, 4 * G + 2 * FC_DIM:4 * G + 4 * FC_DIM]       # (1, 128) f32
    b3 = vec_ref[:, 4 * G + 4 * FC_DIM:4 * G + 4 * FC_DIM + OUT_PAD]

    # Hoisted input projection + fused bias for ALL timesteps & batch rows: one MXU pass,
    # off the serial recurrence path.
    z_all = (jnp.dot(x_ref[...], wih_ref[...], preferred_element_type=jnp.float32)
             + bg)                                               # (T*B, 512) f32

    h = jnp.zeros((B, 2 * HP), jnp.float32)                      # [h_actor(64) | h_critic(64)]
    c = jnp.zeros((B, 2 * HP), jnp.float32)

    def cell(z_t, h, c):
        # One fused (B,128)@(128,512) bf16 matmul per step covers all 4 gates of both heads.
        gates = z_t + jnp.dot(h.astype(jnp.bfloat16), whh,
                              preferred_element_type=jnp.float32)        # (B, 512) f32
        sig = jax.nn.sigmoid(gates[:, 0:3 * G])                          # i | f | o
        g = jnp.tanh(gates[:, 3 * G:4 * G])
        i = sig[:, 0:G]
        f = sig[:, G:2 * G]
        o = sig[:, 2 * G:3 * G]
        c = f * c + i * g
        h = o * jnp.tanh(c)
        return h, c

    if T <= 16:
        # Small static T: fully unrolled so EUP/VPU/MXU work can co-issue.
        for t in range(T):
            h, c = cell(z_all[t * B:(t + 1) * B, :], h, c)
    else:
        # Long sequences: partially-unrolled fori_loop keeps LLO visibility without
        # instruction-count blowup.
        def body(t, carry):
            h, c = carry
            z_t = lax.dynamic_slice_in_dim(z_all, t * B, B, axis=0)
            return cell(z_t, h, c)
        h, c = lax.fori_loop(0, T, body, (h, c), unroll=4)

    th = jnp.tanh(h)                                             # (B, 128); padded lanes are 0
    # concat([tanh(h), y]) @ W2.T + b2 == tanh(h) @ W2h + y * W2y + b2   (per head)
    z2 = jnp.tanh(jnp.dot(th.astype(jnp.bfloat16), w2, preferred_element_type=jnp.float32)
                  + y_ref[...] * w2y + b2)                       # (B, 128)
    out = jnp.tanh(jnp.dot(z2.astype(jnp.bfloat16), w3, preferred_element_type=jnp.float32)
                   + b3)                                         # (B, OUT_PAD)
    out_ref[...] = out.astype(out_ref.dtype)


def actor_critic_forward(x, y, packed):
    """Runs both heads for a batch of sequences in one gridless pallas_call.

    x: (B, T, 3) float, y: (B,) float.
    Returns (action_mean (B, 2), state_value (B, 1)).
    """
    B, T, _ = x.shape
    Bp = max(8, ((B + 7) // 8) * 8)                  # sublane-align the batch
    if Bp != B:
        x = jnp.pad(x, ((0, Bp - B), (0, 0), (0, 0)))
        y = jnp.pad(y, (0, Bp - B))
    # time-major flatten: row t*Bp + b holds x[b, t]
    x_tm = jnp.transpose(x.astype(jnp.float32), (1, 0, 2)).reshape(T * Bp, IN_DIM)
    x_tm = x_tm.astype(jnp.bfloat16)
    y_col = y.reshape(Bp, 1).astype(jnp.float32)

    wih, wmat, vec = packed
    vmem = pl.BlockSpec(memory_space=pltpu.MemorySpace.VMEM)
    out = pl.pallas_call(
        _actor_critic_kernel,
        out_shape=jax.ShapeDtypeStruct((Bp, OUT_PAD), jnp.float32),
        in_specs=[vmem, vmem, vmem, vmem, vmem],
        out_specs=vmem,
    )(x_tm, y_col, wih, wmat, vec)
    return out[:B, 0:2], out[:B, 2:3]


# ---------------- parameter setup (deterministic, PyTorch-default-style uniform init) ----


def init_branch(key, out_dim):
    ks = jax.random.split(key, 8)
    s_lstm = 1.0 / float(jnp.sqrt(HIDDEN))
    s_fc = 1.0 / float(jnp.sqrt(FC_DIM))
    return dict(
        w_ih=jax.random.uniform(ks[0], (4 * HIDDEN, IN_DIM), jnp.float32, -s_lstm, s_lstm),
        w_hh=jax.random.uniform(ks[1], (4 * HIDDEN, HIDDEN), jnp.float32, -s_lstm, s_lstm),
        b_ih=jax.random.uniform(ks[2], (4 * HIDDEN,), jnp.float32, -s_lstm, s_lstm),
        b_hh=jax.random.uniform(ks[3], (4 * HIDDEN,), jnp.float32, -s_lstm, s_lstm),
        w2=jax.random.uniform(ks[4], (FC_DIM, FC_DIM), jnp.float32, -s_fc, s_fc),
        b2=jax.random.uniform(ks[5], (FC_DIM,), jnp.float32, -s_fc, s_fc),
        w3=jax.random.uniform(ks[6], (out_dim, FC_DIM), jnp.float32, -s_fc, s_fc),
        b3=jax.random.uniform(ks[7], (out_dim,), jnp.float32, -s_fc, s_fc),
    )


def pack_combined(pa, pc):
    """Pack actor (pa) + critic (pc) params into the fused, 64-padded, lane-stacked,
    DMA-coalesced layout: (wih bf16, [whh|w2|w3] bf16, [bg|w2y|b2|b3] f32)."""
    def per_head(p):
        wih = jnp.transpose(p["w_ih"].reshape(4, HIDDEN, IN_DIM), (0, 2, 1))   # (4, 3, 63)
        whh = jnp.transpose(p["w_hh"].reshape(4, HIDDEN, HIDDEN), (0, 2, 1))   # (4, 63, 63)
        b = (p["b_ih"] + p["b_hh"]).reshape(4, HIDDEN)                          # (4, 63)
        wih_p = jnp.pad(wih, ((0, 0), (0, 0), (0, HP - HIDDEN)))               # (4, 3, 64)
        whh_p = jnp.pad(whh, ((0, 0), (0, HP - HIDDEN), (0, HP - HIDDEN)))     # (4, 64, 64)
        b_p = jnp.pad(b, ((0, 0), (0, HP - HIDDEN)))                           # (4, 64)
        return wih_p, whh_p, b_p

    wih_a, whh_a, b_a = per_head(pa)
    wih_c, whh_c, b_c = per_head(pc)

    wih_comb = jnp.zeros((IN_DIM, 4 * G), jnp.float32)
    whh_comb = jnp.zeros((2 * HP, 4 * G), jnp.float32)
    bg_comb = jnp.zeros((1, 4 * G), jnp.float32)
    # kernel gate slot order (i, f, o, g); each gate block = [actor 64 | critic 64]
    for slot, gi in enumerate(GATE_ORDER):
        wih_comb = wih_comb.at[:, slot * G:slot * G + HP].set(wih_a[gi])
        wih_comb = wih_comb.at[:, slot * G + HP:(slot + 1) * G].set(wih_c[gi])
        whh_comb = whh_comb.at[0:HP, slot * G:slot * G + HP].set(whh_a[gi])
        whh_comb = whh_comb.at[HP:2 * HP, slot * G + HP:(slot + 1) * G].set(whh_c[gi])
        bg_comb = bg_comb.at[0, slot * G:slot * G + HP].set(b_a[gi])
        bg_comb = bg_comb.at[0, slot * G + HP:(slot + 1) * G].set(b_c[gi])

    def fc2_split(p):
        w2t = p["w2"].T                                   # (64, 64): rows = input features
        w2h = jnp.pad(w2t[:HIDDEN, :], ((0, HP - HIDDEN), (0, 0)))   # (64, 64), row 63 zero
        w2y = w2t[HIDDEN, :]                              # (64,) row multiplying y
        return w2h, w2y, p["b2"]

    w2h_a, w2y_a, b2_a = fc2_split(pa)
    w2h_c, w2y_c, b2_c = fc2_split(pc)
    w2_comb = jnp.zeros((2 * HP, 2 * FC_DIM), jnp.float32)
    w2_comb = w2_comb.at[0:HP, 0:FC_DIM].set(w2h_a)
    w2_comb = w2_comb.at[HP:2 * HP, FC_DIM:2 * FC_DIM].set(w2h_c)
    w2y_comb = jnp.concatenate([w2y_a, w2y_c]).reshape(1, 2 * FC_DIM)
    b2_comb = jnp.concatenate([b2_a, b2_c]).reshape(1, 2 * FC_DIM)

    w3_comb = jnp.zeros((2 * FC_DIM, OUT_PAD), jnp.float32)
    w3_comb = w3_comb.at[0:FC_DIM, 0:2].set(pa["w3"].T)              # actor -> lanes 0:2
    w3_comb = w3_comb.at[FC_DIM:2 * FC_DIM, 2:3].set(pc["w3"].T)     # critic -> lane 2
    b3_comb = jnp.zeros((1, OUT_PAD), jnp.float32)
    b3_comb = b3_comb.at[0, 0:2].set(pa["b3"])
    b3_comb = b3_comb.at[0, 2:3].set(pc["b3"])

    wih = wih_comb.astype(jnp.bfloat16)                                        # (3, 512)
    wmat = jnp.concatenate([whh_comb, w2_comb, w3_comb], axis=1).astype(jnp.bfloat16)  # (128, 768)
    vec = jnp.concatenate([bg_comb, w2y_comb, b2_comb, b3_comb], axis=1)       # (1, 896) f32
    return (wih, wmat, vec)


# ---------------- pure-JAX reference (mirrors the PyTorch forward exactly) ----------------


def reference_branch(x, y, p):
    def cell(carry, xt):
        h, c = carry
        gates = xt @ p["w_ih"].T + p["b_ih"] + h @ p["w_hh"].T + p["b_hh"]
        i, f, g, o = jnp.split(gates, 4)
        i, f, o = jax.nn.sigmoid(i), jax.nn.sigmoid(f), jax.nn.sigmoid(o)
        g = jnp.tanh(g)
        c = f * c + i * g
        h = o * jnp.tanh(c)
        return (h, c), None

    (h, _), _ = lax.scan(cell, (jnp.zeros(HIDDEN), jnp.zeros(HIDDEN)), x)
    z = jnp.concatenate([jnp.tanh(h), y], axis=-1)          # (64,)
    z = jnp.tanh(z @ p["w2"].T + p["b2"])
    return jnp.tanh(z @ p["w3"].T + p["b3"])


if __name__ == "__main__":
    key = jax.random.PRNGKey(0)
    k_in, k_y, k_actor, k_critic = jax.random.split(key, 4)

    B, T = 8, 8
    x = jax.random.normal(k_in, (B, T, IN_DIM), jnp.float32)   # B independent sequences
    y = jax.random.normal(k_y, (B,), jnp.float32)              # per-sequence scalar feature

    actor_params = init_branch(k_actor, out_dim=2)
    critic_params = init_branch(k_critic, out_dim=1)
    packed = pack_combined(actor_params, critic_params)

    action_mean, state_value = actor_critic_forward(x, y, packed)   # (B, 2), (B, 1)
    jax.block_until_ready((action_mean, state_value))

    ref_a = jax.vmap(lambda xb, yb: reference_branch(xb, jnp.reshape(yb, (1,)), actor_params))(x, y)
    ref_c = jax.vmap(lambda xb, yb: reference_branch(xb, jnp.reshape(yb, (1,)), critic_params))(x, y)

    # bf16 weights / bf16 matmul inputs with f32 accumulation -> relaxed tolerance vs f32 ref.
    assert jnp.allclose(action_mean, ref_a, atol=2e-2, rtol=2e-2), (action_mean, ref_a)
    assert jnp.allclose(state_value, ref_c, atol=2e-2, rtol=2e-2), (state_value, ref_c)

    print("KERNEL_OK")
</pallas_src>

<mosaic_0001>
module attributes {stable_mosaic.version = 11 : i64} {
  func.func @_actor_critic_kernel(%arg0: memref<64x3xbf16, #tpu.memory_space<vmem>>, %arg1: memref<8x1xf32, #tpu.memory_space<vmem>>, %arg2: memref<3x512xbf16, #tpu.memory_space<vmem>>, %arg3: memref<128x768xbf16, #tpu.memory_space<vmem>>, %arg4: memref<1x896xf32, #tpu.memory_space<vmem>>, %arg5: memref<8x128xf32, #tpu.memory_space<vmem>>) attributes {dimension_semantics = [], scalar_prefetch = 0 : i64, scratch_operands = 0 : i64, tpu.core_type = #tpu.core_type<tc>} {
    %c0 = arith.constant 0 : index
    %c0_0 = arith.constant 0 : index
    %0 = vector.load %arg3[%c0, %c0_0] : memref<128x768xbf16, #tpu.memory_space<vmem>>, vector<128x512xbf16>
    %c0_1 = arith.constant 0 : index
    %c512 = arith.constant 512 : index
    %1 = vector.load %arg3[%c0_1, %c512] : memref<128x768xbf16, #tpu.memory_space<vmem>>, vector<128x128xbf16>
    %c0_2 = arith.constant 0 : index
    %c640 = arith.constant 640 : index
    %2 = vector.load %arg3[%c0_2, %c640] : memref<128x768xbf16, #tpu.memory_space<vmem>>, vector<128x128xbf16>
    %c0_3 = arith.constant 0 : index
    %c0_4 = arith.constant 0 : index
    %3 = vector.load %arg4[%c0_3, %c0_4] : memref<1x896xf32, #tpu.memory_space<vmem>>, vector<1x512xf32>
    %c0_5 = arith.constant 0 : index
    %c512_6 = arith.constant 512 : index
    %4 = vector.load %arg4[%c0_5, %c512_6] : memref<1x896xf32, #tpu.memory_space<vmem>>, vector<1x128xf32>
    %c0_7 = arith.constant 0 : index
    %c640_8 = arith.constant 640 : index
    %5 = vector.load %arg4[%c0_7, %c640_8] : memref<1x896xf32, #tpu.memory_space<vmem>>, vector<1x128xf32>
    %c0_9 = arith.constant 0 : index
    %c768 = arith.constant 768 : index
    %6 = vector.load %arg4[%c0_9, %c768] : memref<1x896xf32, #tpu.memory_space<vmem>>, vector<1x128xf32>
    %c0_10 = arith.constant 0 : index
    %c0_11 = arith.constant 0 : index
    %7 = vector.load %arg0[%c0_10, %c0_11] : memref<64x3xbf16, #tpu.memory_space<vmem>>, vector<64x3xbf16>
    %c0_12 = arith.constant 0 : index
    %c0_13 = arith.constant 0 : index
    %8 = vector.load %arg2[%c0_12, %c0_13] : memref<3x512xbf16, #tpu.memory_space<vmem>>, vector<3x512xbf16>
    %cst = arith.constant dense<0.000000e+00> : vector<64x512xf32>
    %9 = tpu.matmul %7, %8, %cst {dimension_numbers = #tpu.dot_dimension_numbers<[1], [0], [0], [1], [0, 0, 1, 1], [], []>} : vector<64x3xbf16>, vector<3x512xbf16>, vector<64x512xf32> -> vector<64x512xf32>
    %10 = vector.broadcast %3 : vector<1x512xf32> to vector<64x512xf32>
    %11 = arith.addf %9, %10 : vector<64x512xf32>
    %cst_14 = arith.constant 0.000000e+00 : f32
    %12 = vector.broadcast %cst_14 : f32 to vector<8x128xf32>
    %cst_15 = arith.constant 0.000000e+00 : f32
    %13 = vector.broadcast %cst_15 : f32 to vector<8x128xf32>
    %14 = vector.extract_strided_slice %11 {offsets = [0, 0], sizes = [8, 512], strides = [1, 1]} : vector<64x512xf32> to vector<8x512xf32>
    %15 = arith.truncf %12 : vector<8x128xf32> to vector<8x128xbf16>
    %cst_16 = arith.constant dense<0.000000e+00> : vector<8x512xf32>
    %16 = tpu.matmul %15, %0, %cst_16 {dimension_numbers = #tpu.dot_dimension_numbers<[1], [0], [0], [1], [0, 0, 1, 1], [], []>} : vector<8x128xbf16>, vector<128x512xbf16>, vector<8x512xf32> -> vector<8x512xf32>
    %17 = arith.addf %14, %16 : vector<8x512xf32>
    %18 = vector.extract_strided_slice %17 {offsets = [0, 0], sizes = [8, 384], strides = [1, 1]} : vector<8x512xf32> to vector<8x384xf32>
    %19 = arith.negf %18 : vector<8x384xf32>
    %20 = math.exp %19 : vector<8x384xf32>
    %cst_17 = arith.constant 1.000000e+00 : f32
    %21 = vector.broadcast %cst_17 : f32 to vector<8x384xf32>
    %22 = arith.addf %21, %20 : vector<8x384xf32>
    %23 = arith.divf %21, %22 : vector<8x384xf32>
    %24 = vector.extract_strided_slice %17 {offsets = [0, 384], sizes = [8, 128], strides = [1, 1]} : vector<8x512xf32> to vector<8x128xf32>
    %25 = math.tanh %24 : vector<8x128xf32>
    %26 = vector.extract_strided_slice %23 {offsets = [0, 0], sizes = [8, 128], strides = [1, 1]} : vector<8x384xf32> to vector<8x128xf32>
    %27 = vector.extract_strided_slice %23 {offsets = [0, 128], sizes = [8, 128], strides = [1, 1]} : vector<8x384xf32> to vector<8x128xf32>
    %28 = vector.extract_strided_slice %23 {offsets = [0, 256], sizes = [8, 128], strides = [1, 1]} : vector<8x384xf32> to vector<8x128xf32>
    %29 = arith.mulf %27, %13 : vector<8x128xf32>
    %30 = arith.mulf %26, %25 : vector<8x128xf32>
    %31 = arith.addf %29, %30 : vector<8x128xf32>
    %32 = math.tanh %31 : vector<8x128xf32>
    %33 = arith.mulf %28, %32 : vector<8x128xf32>
    %34 = vector.extract_strided_slice %11 {offsets = [8, 0], sizes = [8, 512], strides = [1, 1]} : vector<64x512xf32> to vector<8x512xf32>
    %35 = arith.truncf %33 : vector<8x128xf32> to vector<8x128xbf16>
    %cst_18 = arith.constant dense<0.000000e+00> : vector<8x512xf32>
    %36 = tpu.matmul %35, %0, %cst_18 {dimension_numbers = #tpu.dot_dimension_numbers<[1], [0], [0], [1], [0, 0, 1, 1], [], []>} : vector<8x128xbf16>, vector<128x512xbf16>, vector<8x512xf32> -> vector<8x512xf32>
    %37 = arith.addf %34, %36 : vector<8x512xf32>
    %38 = vector.extract_strided_slice %37 {offsets = [0, 0], sizes = [8, 384], strides = [1, 1]} : vector<8x512xf32> to vector<8x384xf32>
    %39 = arith.negf %38 : vector<8x384xf32>
    %40 = math.exp %39 : vector<8x384xf32>
    %cst_19 = arith.constant 1.000000e+00 : f32
    %41 = vector.broadcast %cst_19 : f32 to vector<8x384xf32>
    %42 = arith.addf %41, %40 : vector<8x384xf32>
    %43 = arith.divf %41, %42 : vector<8x384xf32>
    %44 = vector.extract_strided_slice %37 {offsets = [0, 384], sizes = [8, 128], strides = [1, 1]} : vector<8x512xf32> to vector<8x128xf32>
    %45 = math.tanh %44 : vector<8x128xf32>
    %46 = vector.extract_strided_slice %43 {offsets = [0, 0], sizes = [8, 128], strides = [1, 1]} : vector<8x384xf32> to vector<8x128xf32>
    %47 = vector.extract_strided_slice %43 {offsets = [0, 128], sizes = [8, 128], strides = [1, 1]} : vector<8x384xf32> to vector<8x128xf32>
    %48 = vector.extract_strided_slice %43 {offsets = [0, 256], sizes = [8, 128], strides = [1, 1]} : vector<8x384xf32> to vector<8x128xf32>
    %49 = arith.mulf %47, %31 : vector<8x128xf32>
    %50 = arith.mulf %46, %45 : vector<8x128xf32>
    %51 = arith.addf %49, %50 : vector<8x128xf32>
    %52 = math.tanh %51 : vector<8x128xf32>
    %53 = arith.mulf %48, %52 : vector<8x128xf32>
    %54 = vector.extract_strided_slice %11 {offsets = [16, 0], sizes = [8, 512], strides = [1, 1]} : vector<64x512xf32> to vector<8x512xf32>
    %55 = arith.truncf %53 : vector<8x128xf32> to vector<8x128xbf16>
    %cst_20 = arith.constant dense<0.000000e+00> : vector<8x512xf32>
    %56 = tpu.matmul %55, %0, %cst_20 {dimension_numbers = #tpu.dot_dimension_numbers<[1], [0], [0], [1], [0, 0, 1, 1], [], []>} : vector<8x128xbf16>, vector<128x512xbf16>, vector<8x512xf32> -> vector<8x512xf32>
    %57 = arith.addf %54, %56 : vector<8x512xf32>
    %58 = vector.extract_strided_slice %57 {offsets = [0, 0], sizes = [8, 384], strides = [1, 1]} : vector<8x512xf32> to vector<8x384xf32>
    %59 = arith.negf %58 : vector<8x384xf32>
    %60 = math.exp %59 : vector<8x384xf32>
    %cst_21 = arith.constant 1.000000e+00 : f32
    %61 = vector.broadcast %cst_21 : f32 to vector<8x384xf32>
    %62 = arith.addf %61, %60 : vector<8x384xf32>
    %63 = arith.divf %61, %62 : vector<8x384xf32>
    %64 = vector.extract_strided_slice %57 {offsets = [0, 384], sizes = [8, 128], strides = [1, 1]} : vector<8x512xf32> to vector<8x128xf32>
    %65 = math.tanh %64 : vector<8x128xf32>
    %66 = vector.extract_strided_slice %63 {offsets = [0, 0], sizes = [8, 128], strides = [1, 1]} : vector<8x384xf32> to vector<8x128xf32>
    %67 = vector.extract_strided_slice %63 {offsets = [0, 128], sizes = [8, 128], strides = [1, 1]} : vector<8x384xf32> to vector<8x128xf32>
    %68 = vector.extract_strided_slice %63 {offsets = [0, 256], sizes = [8, 128], strides = [1, 1]} : vector<8x384xf32> to vector<8x128xf32>
    %69 = arith.mulf %67, %51 : vector<8x128xf32>
    %70 = arith.mulf %66, %65 : vector<8x128xf32>
    %71 = arith.addf %69, %70 : vector<8x128xf32>
    %72 = math.tanh %71 : vector<8x128xf32>
    %73 = arith.mulf %68, %72 : vector<8x128xf32>
    %74 = vector.extract_strided_slice %11 {offsets = [24, 0], sizes = [8, 512], strides = [1, 1]} : vector<64x512xf32> to vector<8x512xf32>
    %75 = arith.truncf %73 : vector<8x128xf32> to vector<8x128xbf16>
    %cst_22 = arith.constant dense<0.000000e+00> : vector<8x512xf32>
    %76 = tpu.matmul %75, %0, %cst_22 {dimension_numbers = #tpu.dot_dimension_numbers<[1], [0], [0], [1], [0, 0, 1, 1], [], []>} : vector<8x128xbf16>, vector<128x512xbf16>, vector<8x512xf32> -> vector<8x512xf32>
    %77 = arith.addf %74, %76 : vector<8x512xf32>
    %78 = vector.extract_strided_slice %77 {offsets = [0, 0], sizes = [8, 384], strides = [1, 1]} : vector<8x512xf32> to vector<8x384xf32>
    %79 = arith.negf %78 : vector<8x384xf32>
    %80 = math.exp %79 : vector<8x384xf32>
    %cst_23 = arith.constant 1.000000e+00 : f32
    %81 = vector.broadcast %cst_23 : f32 to vector<8x384xf32>
    %82 = arith.addf %81, %80 : vector<8x384xf32>
    %83 = arith.divf %81, %82 : vector<8x384xf32>
    %84 = vector.extract_strided_slice %77 {offsets = [0, 384], sizes = [8, 128], strides = [1, 1]} : vector<8x512xf32> to vector<8x128xf32>
    %85 = math.tanh %84 : vector<8x128xf32>
    %86 = vector.extract_strided_slice %83 {offsets = [0, 0], sizes = [8, 128], strides = [1, 1]} : vector<8x384xf32> to vector<8x128xf32>
    %87 = vector.extract_strided_slice %83 {offsets = [0, 128], sizes = [8, 128], strides = [1, 1]} : vector<8x384xf32> to vector<8x128xf32>
    %88 = vector.extract_strided_slice %83 {offsets = [0, 256], sizes = [8, 128], strides = [1, 1]} : vector<8x384xf32> to vector<8x128xf32>
    %89 = arith.mulf %87, %71 : vector<8x128xf32>
    %90 = arith.mulf %86, %85 : vector<8x128xf32>
    %91 = arith.addf %89, %90 : vector<8x128xf32>
    %92 = math.tanh %91 : vector<8x128xf32>
    %93 = arith.mulf %88, %92 : vector<8x128xf32>
    %94 = vector.extract_strided_slice %11 {offsets = [32, 0], sizes = [8, 512], strides = [1, 1]} : vector<64x512xf32> to vector<8x512xf32>
    %95 = arith.truncf %93 : vector<8x128xf32> to vector<8x128xbf16>
    %cst_24 = arith.constant dense<0.000000e+00> : vector<8x512xf32>
    %96 = tpu.matmul %95, %0, %cst_24 {dimension_numbers = #tpu.dot_dimension_numbers<[1], [0], [0], [1], [0, 0, 1, 1], [], []>} : vector<8x128xbf16>, vector<128x512xbf16>, vector<8x512xf32> -> vector<8x512xf32>
    %97 = arith.addf %94, %96 : vector<8x512xf32>
    %98 = vector.extract_strided_slice %97 {offsets = [0, 0], sizes = [8, 384], strides = [1, 1]} : vector<8x512xf32> to vector<8x384xf32>
    %99 = arith.negf %98 : vector<8x384xf32>
    %100 = math.exp %99 : vector<8x384xf32>
    %cst_25 = arith.constant 1.000000e+00 : f32
    %101 = vector.broadcast %cst_25 : f32 to vector<8x384xf32>
    %102 = arith.addf %101, %100 : vector<8x384xf32>
    %103 = arith.divf %101, %102 : vector<8x384xf32>
    %104 = vector.extract_strided_slice %97 {offsets = [0, 384], sizes = [8, 128], strides = [1, 1]} : vector<8x512xf32> to vector<8x128xf32>
    %105 = math.tanh %104 : vector<8x128xf32>
    %106 = vector.extract_strided_slice %103 {offsets = [0, 0], sizes = [8, 128], strides = [1, 1]} : vector<8x384xf32> to vector<8x128xf32>
    %107 = vector.extract_strided_slice %103 {offsets = [0, 128], sizes = [8, 128], strides = [1, 1]} : vector<8x384xf32> to vector<8x128xf32>
    %108 = vector.extract_strided_slice %103 {offsets = [0, 256], sizes = [8, 128], strides = [1, 1]} : vector<8x384xf32> to vector<8x128xf32>
    %109 = arith.mulf %107, %91 : vector<8x128xf32>
    %110 = arith.mulf %106, %105 : vector<8x128xf32>
    %111 = arith.addf %109, %110 : vector<8x128xf32>
    %112 = math.tanh %111 : vector<8x128xf32>
    %113 = arith.mulf %108, %112 : vector<8x128xf32>
    %114 = vector.extract_strided_slice %11 {offsets = [40, 0], sizes = [8, 512], strides = [1, 1]} : vector<64x512xf32> to vector<8x512xf32>
    %115 = arith.truncf %113 : vector<8x128xf32> to vector<8x128xbf16>
    %cst_26 = arith.constant dense<0.000000e+00> : vector<8x512xf32>
    %116 = tpu.matmul %115, %0, %cst_26 {dimension_numbers = #tpu.dot_dimension_numbers<[1], [0], [0], [1], [0, 0, 1, 1], [], []>} : vector<8x128xbf16>, vector<128x512xbf16>, vector<8x512xf32> -> vector<8x512xf32>
    %117 = arith.addf %114, %116 : vector<8x512xf32>
    %118 = vector.extract_strided_slice %117 {offsets = [0, 0], sizes = [8, 384], strides = [1, 1]} : vector<8x512xf32> to vector<8x384xf32>
    %119 = arith.negf %118 : vector<8x384xf32>
    %120 = math.exp %119 : vector<8x384xf32>
    %cst_27 = arith.constant 1.000000e+00 : f32
    %121 = vector.broadcast %cst_27 : f32 to vector<8x384xf32>
    %122 = arith.addf %121, %120 : vector<8x384xf32>
    %123 = arith.divf %121, %122 : vector<8x384xf32>
    %124 = vector.extract_strided_slice %117 {offsets = [0, 384], sizes = [8, 128], strides = [1, 1]} : vector<8x512xf32> to vector<8x128xf32>
    %125 = math.tanh %124 : vector<8x128xf32>
    %126 = vector.extract_strided_slice %123 {offsets = [0, 0], sizes = [8, 128], strides = [1, 1]} : vector<8x384xf32> to vector<8x128xf32>
    %127 = vector.extract_strided_slice %123 {offsets = [0, 128], sizes = [8, 128], strides = [1, 1]} : vector<8x384xf32> to vector<8x128xf32>
    %128 = vector.extract_strided_slice %123 {offsets = [0, 256], sizes = [8, 128], strides = [1, 1]} : vector<8x384xf32> to vector<8x128xf32>
    %129 = arith.mulf %127, %111 : vector<8x128xf32>
    %130 = arith.mulf %126, %125 : vector<8x128xf32>
    %131 = arith.addf %129, %130 : vector<8x128xf32>
    %132 = math.tanh %131 : vector<8x128xf32>
    %133 = arith.mulf %128, %132 : vector<8x128xf32>
    %134 = vector.extract_strided_slice %11 {offsets = [48, 0], sizes = [8, 512], strides = [1, 1]} : vector<64x512xf32> to vector<8x512xf32>
    %135 = arith.truncf %133 : vector<8x128xf32> to vector<8x128xbf16>
    %cst_28 = arith.constant dense<0.000000e+00> : vector<8x512xf32>
    %136 = tpu.matmul %135, %0, %cst_28 {dimension_numbers = #tpu.dot_dimension_numbers<[1], [0], [0], [1], [0, 0, 1, 1], [], []>} : vector<8x128xbf16>, vector<128x512xbf16>, vector<8x512xf32> -> vector<8x512xf32>
    %137 = arith.addf %134, %136 : vector<8x512xf32>
    %138 = vector.extract_strided_slice %137 {offsets = [0, 0], sizes = [8, 384], strides = [1, 1]} : vector<8x512xf32> to vector<8x384xf32>
    %139 = arith.negf %138 : vector<8x384xf32>
    %140 = math.exp %139 : vector<8x384xf32>
    %cst_29 = arith.constant 1.000000e+00 : f32
    %141 = vector.broadcast %cst_29 : f32 to vector<8x384xf32>
    %142 = arith.addf %141, %140 : vector<8x384xf32>
    %143 = arith.divf %141, %142 : vector<8x384xf32>
    %144 = vector.extract_strided_slice %137 {offsets = [0, 384], sizes = [8, 128], strides = [1, 1]} : vector<8x512xf32> to vector<8x128xf32>
    %145 = math.tanh %144 : vector<8x128xf32>
    %146 = vector.extract_strided_slice %143 {offsets = [0, 0], sizes = [8, 128], strides = [1, 1]} : vector<8x384xf32> to vector<8x128xf32>
    %147 = vector.extract_strided_slice %143 {offsets = [0, 128], sizes = [8, 128], strides = [1, 1]} : vector<8x384xf32> to vector<8x128xf32>
    %148 = vector.extract_strided_slice %143 {offsets = [0, 256], sizes = [8, 128], strides = [1, 1]} : vector<8x384xf32> to vector<8x128xf32>
    %149 = arith.mulf %147, %131 : vector<8x128xf32>
    %150 = arith.mulf %146, %145 : vector<8x128xf32>
    %151 = arith.addf %149, %150 : vector<8x128xf32>
    %152 = math.tanh %151 : vector<8x128xf32>
    %153 = arith.mulf %148, %152 : vector<8x128xf32>
    %154 = vector.extract_strided_slice %11 {offsets = [56, 0], sizes = [8, 512], strides = [1, 1]} : vector<64x512xf32> to vector<8x512xf32>
    %155 = arith.truncf %153 : vector<8x128xf32> to vector<8x128xbf16>
    %cst_30 = arith.constant dense<0.000000e+00> : vector<8x512xf32>
    %156 = tpu.matmul %155, %0, %cst_30 {dimension_numbers = #tpu.dot_dimension_numbers<[1], [0], [0], [1], [0, 0, 1, 1], [], []>} : vector<8x128xbf16>, vector<128x512xbf16>, vector<8x512xf32> -> vector<8x512xf32>
    %157 = arith.addf %154, %156 : vector<8x512xf32>
    %158 = vector.extract_strided_slice %157 {offsets = [0, 0], sizes = [8, 384], strides = [1, 1]} : vector<8x512xf32> to vector<8x384xf32>
    %159 = arith.negf %158 : vector<8x384xf32>
    %160 = math.exp %159 : vector<8x384xf32>
    %cst_31 = arith.constant 1.000000e+00 : f32
    %161 = vector.broadcast %cst_31 : f32 to vector<8x384xf32>
    %162 = arith.addf %161, %160 : vector<8x384xf32>
    %163 = arith.divf %161, %162 : vector<8x384xf32>
    %164 = vector.extract_strided_slice %157 {offsets = [0, 384], sizes = [8, 128], strides = [1, 1]} : vector<8x512xf32> to vector<8x128xf32>
    %165 = math.tanh %164 : vector<8x128xf32>
    %166 = vector.extract_strided_slice %163 {offsets = [0, 0], sizes = [8, 128], strides = [1, 1]} : vector<8x384xf32> to vector<8x128xf32>
    %167 = vector.extract_strided_slice %163 {offsets = [0, 128], sizes = [8, 128], strides = [1, 1]} : vector<8x384xf32> to vector<8x128xf32>
    %168 = vector.extract_strided_slice %163 {offsets = [0, 256], sizes = [8, 128], strides = [1, 1]} : vector<8x384xf32> to vector<8x128xf32>
    %169 = arith.mulf %167, %151 : vector<8x128xf32>
    %170 = arith.mulf %166, %165 : vector<8x128xf32>
    %171 = arith.addf %169, %170 : vector<8x128xf32>
    %172 = math.tanh %171 : vector<8x128xf32>
    %173 = arith.mulf %168, %172 : vector<8x128xf32>
    %174 = math.tanh %173 : vector<8x128xf32>
    %175 = arith.truncf %174 : vector<8x128xf32> to vector<8x128xbf16>
    %cst_32 = arith.constant dense<0.000000e+00> : vector<8x128xf32>
    %176 = tpu.matmul %175, %1, %cst_32 {dimension_numbers = #tpu.dot_dimension_numbers<[1], [0], [0], [1], [0, 0, 1, 1], [], []>} : vector<8x128xbf16>, vector<128x128xbf16>, vector<8x128xf32> -> vector<8x128xf32>
    %c0_33 = arith.constant 0 : index
    %c0_34 = arith.constant 0 : index
    %177 = vector.load %arg1[%c0_33, %c0_34] : memref<8x1xf32, #tpu.memory_space<vmem>>, vector<8x1xf32>
    %178 = vector.broadcast %177 : vector<8x1xf32> to vector<8x128xf32>
    %179 = vector.broadcast %4 : vector<1x128xf32> to vector<8x128xf32>
    %180 = arith.mulf %178, %179 : vector<8x128xf32>
    %181 = arith.addf %176, %180 : vector<8x128xf32>
    %182 = vector.broadcast %5 : vector<1x128xf32> to vector<8x128xf32>
    %183 = arith.addf %181, %182 : vector<8x128xf32>
    %184 = math.tanh %183 : vector<8x128xf32>
    %185 = arith.truncf %184 : vector<8x128xf32> to vector<8x128xbf16>
    %cst_35 = arith.constant dense<0.000000e+00> : vector<8x128xf32>
    %186 = tpu.matmul %185, %2, %cst_35 {dimension_numbers = #tpu.dot_dimension_numbers<[1], [0], [0], [1], [0, 0, 1, 1], [], []>} : vector<8x128xbf16>, vector<128x128xbf16>, vector<8x128xf32> -> vector<8x128xf32>
    %187 = vector.broadcast %6 : vector<1x128xf32> to vector<8x128xf32>
    %188 = arith.addf %186, %187 : vector<8x128xf32>
    %189 = math.tanh %188 : vector<8x128xf32>
    %c0_36 = arith.constant 0 : index
    %c0_37 = arith.constant 0 : index
    %190 = vector.load %arg5[%c0_36, %c0_37] : memref<8x128xf32, #tpu.memory_space<vmem>>, vector<8x128xf32>
    tpu.vector_store %arg5[%c0_36, %c0_37], %189 {strides = array<i32>} : memref<8x128xf32, #tpu.memory_space<vmem>>, vector<8x128xf32>,
    return
  }
}

</mosaic_0001>

<llo_original>
// kernel: tpu_custom_call.1
$region0: #{tpu_custom_call.1}
  #allocation0 [shape = 'u32[]', space=smem, size = 0x4, offset = 0x4, fixed_abs, tag = 'smem constant byte address 0x4 - core index']
  #allocation1 [shape = 'u32[72,128]{1,0:T(1,128)}', space=vmem, size = 0x9000, scoped, tag = 'internal scratch']
  %s0 = inlined_call_operand.vmem [shape: bf16[64,3], index: 0, kind: input, shape index: {}]
  %s1 = inlined_call_operand.vmem [shape: f32[8,1], index: 1, kind: input, shape index: {}]
  %s2 = inlined_call_operand.vmem [shape: bf16[3,512], index: 2, kind: input, shape index: {}]
  %s3 = inlined_call_operand.hbm [shape: bf16[128,768], index: 3, kind: input, shape index: {}]
  %s4 = inlined_call_operand.vmem [shape: f32[1,896], index: 4, kind: input, shape index: {}]
  %s5 = inlined_call_operand.hbm [shape: f32[8,128], index: 5, kind: output, shape index: {}]
  %s6 = sld [smem:[#allocation0]]
  $region34: #{tpu_custom_call.1} parent=0
    _
  %s8 = ssub.s32 1, %s6
  %s9 = scalar_select 0, %s8, %s6
  $region1: #{tpu_custom_call.1} parent=0
    #allocation2 [shape = 'u8[196608]{0}', space=vmem, size = 0x30000, scoped, tag = 'input window, operand 3, single buffered']
    #allocation3 [shape = 's32[1]{0}', space=sflag, size = 0x4, scoped, tag = 'scoped memory for tpu_custom_call.1']
    #allocation4 [shape = 's32[1]{0}', space=sflag, size = 0x4, scoped, tag = 'scoped memory for tpu_custom_call.1']
    #allocation5 [shape = 'u8[4096]{0}', space=vmem, size = 0x1000, scoped, tag = 'output window, operand 0, single buffered']
    %10 = vsyncpa [#allocation3], 0
    %11 = vsyncpa [#allocation4], 0
    // Predicated region
    $region2: #{tpu_custom_call.1} parent=1 // pred_check
      _
    $region3: #{tpu_custom_call.1} parent=1 // pred_check_branch
      %13 = sbr.rel (0) target = $region5
    $region4: #{tpu_custom_call.1} parent=1 // pred_region
      _
    $region5: #{tpu_custom_call.1} parent=1 // pred_fallthru
      _
    // Predicated region
    $region6: #{tpu_custom_call.1} parent=1 // pred_check
      _
    $region7: #{tpu_custom_call.1} parent=1 // pred_check_branch
      %15 = sbr.rel (0) target = $region9
    $region8: #{tpu_custom_call.1} parent=1 // pred_region
      _
    $region9: #{tpu_custom_call.1} parent=1 // pred_fallthru
      _
    // Predicated region
    $region10: #{tpu_custom_call.1} parent=1 // pred_check
      _
    $region11: #{tpu_custom_call.1} parent=1 // pred_check_branch
      %17 = sbr.rel (0) target = $region13
    $region12: #{tpu_custom_call.1} parent=1 // pred_region
      _
    $region13: #{tpu_custom_call.1} parent=1 // pred_fallthru
      _
    // Predicated region
    $region14: #{tpu_custom_call.1} parent=1 // pred_check
      _
    $region15: #{tpu_custom_call.1} parent=1 // pred_check_branch
      %19 = sbr.rel (0) target = $region17
    $region16: #{tpu_custom_call.1} parent=1 // pred_region
      %21 = vsyncadd [#allocation3], 0
      %s22 = sshll.u32 %s3, 4
      %s23 = int_to_ptr.hbm [resolvable:$true] %s22
      %s24 = sshll.u32 [#allocation2], 4
      %s25 = int_to_ptr.vmem [resolvable:$true] %s24
      %30 = dma.hbm_to_vmem [thread:$0]  %s23, 6144, %s25, [#allocation3], 384, 384, 24
    $region17: #{tpu_custom_call.1} parent=1 // pred_fallthru
      _
    // Predicated region
    $region18: #{tpu_custom_call.1} parent=1 // pred_check
      _
    $region19: #{tpu_custom_call.1} parent=1 // pred_check_branch
      %32 = sbr.rel (0) target = $region21
    $region20: #{tpu_custom_call.1} parent=1 // pred_region
      _
    $region21: #{tpu_custom_call.1} parent=1 // pred_fallthru
      _
    // Predicated region
    $region22: #{tpu_custom_call.1} parent=1 // pred_check
      _
    $region23: #{tpu_custom_call.1} parent=1 // pred_check_branch
      %34 = sbr.rel (0) target = $region25
    $region24: #{tpu_custom_call.1} parent=1 // pred_region
      %36 = dma.done [#allocation3], 6144
    $region25: #{tpu_custom_call.1} parent=1 // pred_fallthru
      _
    %v38 = vld [vmem:[#allocation2] sm:$0xff]
    %v39 = vld [vmem:[#allocation2 + $0x8] sm:$0xff]
    %v40 = vld [vmem:[#allocation2 + $0x18] sm:$0xff]
    %v41 = vld [vmem:[#allocation2 + $0x20] sm:$0xff]
    %v42 = vld [vmem:[#allocation2 + $0x30] sm:$0xff]
    %v43 = vld [vmem:[#allocation2 + $0x38] sm:$0xff]
    %v44 = vld [vmem:[#allocation2 + $0x48] sm:$0xff]
    %v45 = vld [vmem:[#allocation2 + $0x50] sm:$0xff]
    %v46 = vld [vmem:[#allocation2 + $0x60] sm:$0xff]
    %v47 = vld [vmem:[#allocation2 + $0x68] sm:$0xff]
    %v48 = vld [vmem:[#allocation2 + $0x78] sm:$0xff]
    %v49 = vld [vmem:[#allocation2 + $0x80] sm:$0xff]
    %v50 = vld [vmem:[#allocation2 + $0x90] sm:$0xff]
    %v51 = vld [vmem:[#allocation2 + $0x98] sm:$0xff]
    %v52 = vld [vmem:[#allocation2 + $0xa8] sm:$0xff]
    %v53 = vld [vmem:[#allocation2 + $0xb0] sm:$0xff]
    %v54 = vld [vmem:[#allocation2 + $0xc0] sm:$0xff]
    %v55 = vld [vmem:[#allocation2 + $0xc8] sm:$0xff]
    %v56 = vld [vmem:[#allocation2 + $0xd8] sm:$0xff]
    %v57 = vld [vmem:[#allocation2 + $0xe0] sm:$0xff]
    %v58 = vld [vmem:[#allocation2 + $0xf0] sm:$0xff]
    %v59 = vld [vmem:[#allocation2 + $0xf8] sm:$0xff]
    %v60 = vld [vmem:[#allocation2 + $0x108] sm:$0xff]
    %v61 = vld [vmem:[#allocation2 + $0x110] sm:$0xff]
    %v62 = vld [vmem:[#allocation2 + $0x120] sm:$0xff]
    %v63 = vld [vmem:[#allocation2 + $0x128] sm:$0xff]
    %v64 = vld [vmem:[#allocation2 + $0x138] sm:$0xff]
    %v65 = vld [vmem:[#allocation2 + $0x140] sm:$0xff]
    %v66 = vld [vmem:[#allocation2 + $0x150] sm:$0xff]
    %v67 = vld [vmem:[#allocation2 + $0x158] sm:$0xff]
    %v68 = vld [vmem:[#allocation2 + $0x168] sm:$0xff]
    %v69 = vld [vmem:[#allocation2 + $0x170] sm:$0xff]
    %v70 = vld [vmem:[#allocation2 + $0x10] sm:$0xf]
    %v71 = vld [vmem:[#allocation2 + $0x28] sm:$0xf]
    %v72 = vld [vmem:[#allocation2 + $0x40] sm:$0xf]
    %v73 = vld [vmem:[#allocation2 + $0x58] sm:$0xf]
    %v74 = vld [vmem:[#allocation2 + $0x70] sm:$0xf]
    %v75 = vld [vmem:[#allocation2 + $0x88] sm:$0xf]
    %v76 = vld [vmem:[#allocation2 + $0xa0] sm:$0xf]
    %v77 = vld [vmem:[#allocation2 + $0xb8] sm:$0xf]
    %v78 = vld [vmem:[#allocation2 + $0xd0] sm:$0xf]
    %v79 = vld [vmem:[#allocation2 + $0xe8] sm:$0xf]
    %v80 = vld [vmem:[#allocation2 + $0x100] sm:$0xf]
    %v81 = vld [vmem:[#allocation2 + $0x118] sm:$0xf]
    %v82 = vld [vmem:[#allocation2 + $0x130] sm:$0xf]
    %v83 = vld [vmem:[#allocation2 + $0x148] sm:$0xf]
    %v84 = vld [vmem:[#allocation2 + $0x160] sm:$0xf]
    %v85 = vld [vmem:[#allocation2 + $0x178] sm:$0xf]
    %v86 = vld [vmem:[#allocation2 + $0x14] sm:$0xf]
    %v87 = vld [vmem:[#allocation2 + $0x2c] sm:$0xf]
    %v88 = vld [vmem:[#allocation2 + $0x44] sm:$0xf]
    %v89 = vld [vmem:[#allocation2 + $0x5c] sm:$0xf]
    %v90 = vld [vmem:[#allocation2 + $0x74] sm:$0xf]
    %v91 = vld [vmem:[#allocation2 + $0x8c] sm:$0xf]
    %v92 = vld [vmem:[#allocation2 + $0xa4] sm:$0xf]
    %v93 = vld [vmem:[#allocation2 + $0xbc] sm:$0xf]
    %v94 = vld [vmem:[#allocation2 + $0xd4] sm:$0xf]
    %v95 = vld [vmem:[#allocation2 + $0xec] sm:$0xf]
    %v96 = vld [vmem:[#allocation2 + $0x104] sm:$0xf]
    %v97 = vld [vmem:[#allocation2 + $0x11c] sm:$0xf]
    %v98 = vld [vmem:[#allocation2 + $0x134] sm:$0xf]
    %v99 = vld [vmem:[#allocation2 + $0x14c] sm:$0xf]
    %v100 = vld [vmem:[#allocation2 + $0x164] sm:$0xf]
    %v101 = vld [vmem:[#allocation2 + $0x17c] sm:$0xf]
    %v102 = vld [vmem:[%s4] sm:$0xf]
    %v103 = vld [vmem:[%s4 + $0x4] sm:$0x1]
    %v104 = vld [vmem:[%s4 + $0x5] sm:$0x1]
    %v105 = vld [vmem:[%s4 + $0x6] sm:$0x1]
    %v106 = vld [vmem:[%s0] sm:$0xf]
    %v107 = vld [vmem:[%s0 + $0x4] sm:$0xf]
    %v108 = vld [vmem:[%s0 + $0x8] sm:$0xf]
    %v109 = vld [vmem:[%s0 + $0xc] sm:$0xf]
    %v110 = vld [vmem:[%s0 + $0x10] sm:$0xf]
    %v111 = vld [vmem:[%s0 + $0x14] sm:$0xf]
    %v112 = vld [vmem:[%s0 + $0x18] sm:$0xf]
    %v113 = vld [vmem:[%s0 + $0x1c] sm:$0xf]
    %v114 = vld [vmem:[%s2] sm:$0xff]
    %v116 = vperm.slane %v102, 0
    %v117 = vperm.slane %v102, 1
    %v118 = vperm.slane %v102, 2
    %v119 = vperm.slane %v102, 3
    %v132 = vunpack.c.l.b16 %v106
    %v133 = vunpack.c.l.b16 %v107
    %v134 = vunpack.c.l.b16 %v108
    %v135 = vunpack.c.l.b16 %v109
    %v136 = vunpack.c.l.b16 %v110
    %v137 = vunpack.c.l.b16 %v111
    %v138 = vunpack.c.l.b16 %v112
    %v139 = vunpack.c.l.b16 %v113
    %v140 = vpack.c.b16 %v133, %v132
    %v141 = vpack.c.b16 %v135, %v134
    %v142 = vpack.c.b16 %v137, %v136
    %v143 = vpack.c.b16 %v139, %v138
    %145 = vst [vmem:[#allocation1] ss:$4 sm:$0xff] %v114
    %v146 = vld.sshfl [vmem:[#allocation1] sm:$0xff pattern:$0x73625140]
    %v147 = vld.sshfl [vmem:[#allocation1 + $0x8] sm:$0xff pattern:$0x73625140]
    %v148 = vld.sshfl [vmem:[#allocation1 + $0x10] sm:$0xff pattern:$0x73625140]
    %v149 = vld.sshfl [vmem:[#allocation1 + $0x18] sm:$0xff pattern:$0x73625140]
    %vm150 = vcmask 23552
    %v152 = vsel %vm150, %v140, 0
    %v155 = vsel %vm150, %v141, 0
    %v158 = vsel %vm150, %v142, 0
    %v161 = vsel %vm150, %v143, 0
    %vm163 = vcmask 1040384
    %vm164 = vcmask 1041408
    %v165 = vsel %vm163, 4294967295, 65535
    %v166 = vsel %vm164, %v165, 0
    %v167 = vand.u32 %v146, %v166
    %v169 = vand.u32 %v147, %v166
    %v171 = vand.u32 %v148, %v166
    %v173 = vand.u32 %v149, %v166
    %175 = vmatpush.bf16.msra.mxu0 0
    %176 = vmatpush.bf16.msra.mxu0 0
    %177 = vmatpush.bf16.msra.mxu0 0
    %178 = vmatpush.bf16.msra.mxu0 0
    %179 = vmatpush.bf16.msra.mxu0 0
    %180 = vmatpush.bf16.msra.mxu0 0
    %181 = vmatpush.bf16.msra.mxu0 0
    %182 = vmatpush.bf16.msra.mxu0 %v167
    %183 = vmatmul.bf16.gmra.mxu0 %v152
    %v184 = vpop.f32.mrf.mxu0
    %v185 = vadd.f32 %v116, %v184
    %v186 = vpop.f32.mrf.mxu0
    %v187 = vadd.f32 %v116, %v186
    %188 = vmatmul.bf16.gmra.mxu0 %v155
    %v189 = vpop.f32.mrf.mxu0
    %v190 = vadd.f32 %v116, %v189
    %v191 = vpop.f32.mrf.mxu0
    %v192 = vadd.f32 %v116, %v191
    %193 = vmatmul.bf16.gmra.mxu0 %v158
    %v194 = vpop.f32.mrf.mxu0
    %v195 = vadd.f32 %v116, %v194
    %v196 = vpop.f32.mrf.mxu0
    %v197 = vadd.f32 %v116, %v196
    %198 = vmatmul.bf16.gmra.mxu0 %v161
    %v199 = vpop.f32.mrf.mxu0
    %v200 = vadd.f32 %v116, %v199
    %v201 = vpop.f32.mrf.mxu0
    %v202 = vadd.f32 %v116, %v201
    %203 = vdwg.mxu0
    %204 = vmatpush.bf16.msra.mxu0 0
    %205 = vmatpush.bf16.msra.mxu0 0
    %206 = vmatpush.bf16.msra.mxu0 0
    %207 = vmatpush.bf16.msra.mxu0 0
    %208 = vmatpush.bf16.msra.mxu0 0
    %209 = vmatpush.bf16.msra.mxu0 0
    %210 = vmatpush.bf16.msra.mxu0 0
    %211 = vmatpush.bf16.msra.mxu0 %v169
    %212 = vmatmul.bf16.gmra.mxu0 %v152
    %v213 = vpop.f32.mrf.mxu0
    %v214 = vadd.f32 %v117, %v213
    %v215 = vpop.f32.mrf.mxu0
    %v216 = vadd.f32 %v117, %v215
    %217 = vmatmul.bf16.gmra.mxu0 %v155
    %v218 = vpop.f32.mrf.mxu0
    %v219 = vadd.f32 %v117, %v218
    %v220 = vpop.f32.mrf.mxu0
    %v221 = vadd.f32 %v117, %v220
    %222 = vmatmul.bf16.gmra.mxu0 %v158
    %v223 = vpop.f32.mrf.mxu0
    %v224 = vadd.f32 %v117, %v223
    %v225 = vpop.f32.mrf.mxu0
    %v226 = vadd.f32 %v117, %v225
    %227 = vmatmul.bf16.gmra.mxu0 %v161
    %v228 = vpop.f32.mrf.mxu0
    %v229 = vadd.f32 %v117, %v228
    %v230 = vpop.f32.mrf.mxu0
    %v231 = vadd.f32 %v117, %v230
    %232 = vdwg.mxu0
    %233 = vmatpush.bf16.msra.mxu0 0
    %234 = vmatpush.bf16.msra.mxu0 0
    %235 = vmatpush.bf16.msra.mxu0 0
    %236 = vmatpush.bf16.msra.mxu0 0
    %237 = vmatpush.bf16.msra.mxu0 0
    %238 = vmatpush.bf16.msra.mxu0 0
    %239 = vmatpush.bf16.msra.mxu0 0
    %240 = vmatpush.bf16.msra.mxu0 %v171
    %241 = vmatmul.bf16.gmra.mxu0 %v152
    %v242 = vpop.f32.mrf.mxu0
    %v243 = vadd.f32 %v118, %v242
    %v244 = vpop.f32.mrf.mxu0
    %v245 = vadd.f32 %v118, %v244
    %246 = vmatmul.bf16.gmra.mxu0 %v155
    %v247 = vpop.f32.mrf.mxu0
    %v248 = vadd.f32 %v118, %v247
    %v249 = vpop.f32.mrf.mxu0
    %v250 = vadd.f32 %v118, %v249
    %251 = vmatmul.bf16.gmra.mxu0 %v158
    %v252 = vpop.f32.mrf.mxu0
    %v253 = vadd.f32 %v118, %v252
    %v254 = vpop.f32.mrf.mxu0
    %v255 = vadd.f32 %v118, %v254
    %256 = vmatmul.bf16.gmra.mxu0 %v161
    %v257 = vpop.f32.mrf.mxu0
    %v258 = vadd.f32 %v118, %v257
    %v259 = vpop.f32.mrf.mxu0
    %v260 = vadd.f32 %v118, %v259
    %261 = vdwg.mxu0
    %262 = vmatpush.bf16.msra.mxu0 0
    %263 = vmatpush.bf16.msra.mxu0 0
    %264 = vmatpush.bf16.msra.mxu0 0
    %265 = vmatpush.bf16.msra.mxu0 0
    %266 = vmatpush.bf16.msra.mxu0 0
    %267 = vmatpush.bf16.msra.mxu0 0
    %268 = vmatpush.bf16.msra.mxu0 0
    %269 = vmatpush.bf16.msra.mxu0 %v173
    %270 = vmatmul.bf16.gmra.mxu0 %v152
    %v271 = vpop.f32.mrf.mxu0
    %v272 = vadd.f32 %v119, %v271
    %v273 = vpop.f32.mrf.mxu0
    %v274 = vadd.f32 %v119, %v273
    %275 = vmatmul.bf16.gmra.mxu0 %v155
    %v276 = vpop.f32.mrf.mxu0
    %v277 = vadd.f32 %v119, %v276
    %v278 = vpop.f32.mrf.mxu0
    %v279 = vadd.f32 %v119, %v278
    %280 = vmatmul.bf16.gmra.mxu0 %v158
    %v281 = vpop.f32.mrf.mxu0
    %v282 = vadd.f32 %v119, %v281
    %v283 = vpop.f32.mrf.mxu0
    %v284 = vadd.f32 %v119, %v283
    %285 = vmatmul.bf16.gmra.mxu0 %v161
    %v286 = vpop.f32.mrf.mxu0
    %v287 = vadd.f32 %v119, %v286
    %v288 = vpop.f32.mrf.mxu0
    %v289 = vadd.f32 %v119, %v288
    %290 = vdwg.mxu0
    %v323 = vunpack.c.l.b16 %v38
    %v324 = vunpack.c.h.b16 %v38
    %v325 = vunpack.c.l.b16 %v39
    %v326 = vunpack.c.h.b16 %v39
    %v327 = vunpack.c.l.b16 %v40
    %v328 = vunpack.c.h.b16 %v40
    %v329 = vunpack.c.l.b16 %v41
    %v330 = vunpack.c.h.b16 %v41
    %v331 = vunpack.c.l.b16 %v42
    %v332 = vunpack.c.h.b16 %v42
    %v333 = vunpack.c.l.b16 %v43
    %v334 = vunpack.c.h.b16 %v43
    %v335 = vunpack.c.l.b16 %v44
    %v336 = vunpack.c.h.b16 %v44
    %v337 = vunpack.c.l.b16 %v45
    %v338 = vunpack.c.h.b16 %v45
    %v339 = vunpack.c.l.b16 %v46
    %v340 = vunpack.c.h.b16 %v46
    %v341 = vunpack.c.l.b16 %v47
    %v342 = vunpack.c.h.b16 %v47
    %v343 = vunpack.c.l.b16 %v48
    %v344 = vunpack.c.h.b16 %v48
    %v345 = vunpack.c.l.b16 %v49
    %v346 = vunpack.c.h.b16 %v49
    %v347 = vunpack.c.l.b16 %v50
    %v348 = vunpack.c.h.b16 %v50
    %v349 = vunpack.c.l.b16 %v51
    %v350 = vunpack.c.h.b16 %v51
    %v351 = vunpack.c.l.b16 %v52
    %v352 = vunpack.c.h.b16 %v52
    %v353 = vunpack.c.l.b16 %v53
    %v354 = vunpack.c.h.b16 %v53
    %v355 = vunpack.c.l.b16 %v54
    %v356 = vunpack.c.h.b16 %v54
    %v357 = vunpack.c.l.b16 %v55
    %v358 = vunpack.c.h.b16 %v55
    %v359 = vunpack.c.l.b16 %v56
    %v360 = vunpack.c.h.b16 %v56
    %v361 = vunpack.c.l.b16 %v57
    %v362 = vunpack.c.h.b16 %v57
    %v363 = vunpack.c.l.b16 %v58
    %v364 = vunpack.c.h.b16 %v58
    %v365 = vunpack.c.l.b16 %v59
    %v366 = vunpack.c.h.b16 %v59
    %v367 = vunpack.c.l.b16 %v60
    %v368 = vunpack.c.h.b16 %v60
    %v369 = vunpack.c.l.b16 %v61
    %v370 = vunpack.c.h.b16 %v61
    %v371 = vunpack.c.l.b16 %v62
    %v372 = vunpack.c.h.b16 %v62
    %v373 = vunpack.c.l.b16 %v63
    %v374 = vunpack.c.h.b16 %v63
    %v375 = vunpack.c.l.b16 %v64
    %v376 = vunpack.c.h.b16 %v64
    %v377 = vunpack.c.l.b16 %v65
    %v378 = vunpack.c.h.b16 %v65
    %v379 = vunpack.c.l.b16 %v66
    %v380 = vunpack.c.h.b16 %v66
    %v381 = vunpack.c.l.b16 %v67
    %v382 = vunpack.c.h.b16 %v67
    %v383 = vunpack.c.l.b16 %v68
    %v384 = vunpack.c.h.b16 %v68
    %v385 = vunpack.c.l.b16 %v69
    %v386 = vunpack.c.h.b16 %v69
    %v387 = vpack.c.b16 %v327, %v323
    %v388 = vpack.c.b16 %v328, %v324
    %v389 = vpack.c.b16 %v329, %v325
    %v390 = vpack.c.b16 %v330, %v326
    %v391 = vpack.c.b16 %v335, %v331
    %v392 = vpack.c.b16 %v336, %v332
    %v393 = vpack.c.b16 %v337, %v333
    %v394 = vpack.c.b16 %v338, %v334
    %v395 = vpack.c.b16 %v343, %v339
    %v396 = vpack.c.b16 %v344, %v340
    %v397 = vpack.c.b16 %v345, %v341
    %v398 = vpack.c.b16 %v346, %v342
    %v399 = vpack.c.b16 %v351, %v347
    %v400 = vpack.c.b16 %v352, %v348
    %v401 = vpack.c.b16 %v353, %v349
    %v402 = vpack.c.b16 %v354, %v350
    %v403 = vpack.c.b16 %v359, %v355
    %v404 = vpack.c.b16 %v360, %v356
    %v405 = vpack.c.b16 %v361, %v357
    %v406 = vpack.c.b16 %v362, %v358
    %v407 = vpack.c.b16 %v367, %v363
    %v408 = vpack.c.b16 %v368, %v364
    %v409 = vpack.c.b16 %v369, %v365
    %v410 = vpack.c.b16 %v370, %v366
    %v411 = vpack.c.b16 %v375, %v371
    %v412 = vpack.c.b16 %v376, %v372
    %v413 = vpack.c.b16 %v377, %v373
    %v414 = vpack.c.b16 %v378, %v374
    %v415 = vpack.c.b16 %v383, %v379
    %v416 = vpack.c.b16 %v384, %v380
    %v417 = vpack.c.b16 %v385, %v381
    %v418 = vpack.c.b16 %v386, %v382
    %451 = vmatpush.bf16.msra.mxu0 %v415
    %452 = vmatpush.bf16.msra.mxu0 %v411
    %453 = vmatpush.bf16.msra.mxu0 %v407
    %454 = vmatpush.bf16.msra.mxu0 %v403
    %455 = vmatpush.bf16.msra.mxu0 %v399
    %456 = vmatpush.bf16.msra.mxu0 %v395
    %457 = vmatpush.bf16.msra.mxu0 %v391
    %458 = vmatpush.bf16.msra.mxu0 %v387
    %459 = vmatmul.bf16.gmra.mxu0 0
    %v460 = vpop.f32.mrf.mxu0
    %v461 = vadd.f32 0.0, %v460
    %v462 = vpop.f32.mrf.mxu0
    %463 = vdwg.mxu0
    %464 = vmatpush.bf16.msra.mxu0 %v416
    %465 = vmatpush.bf16.msra.mxu0 %v412
    %466 = vmatpush.bf16.msra.mxu0 %v408
    %467 = vmatpush.bf16.msra.mxu0 %v404
    %468 = vmatpush.bf16.msra.mxu0 %v400
    %469 = vmatpush.bf16.msra.mxu0 %v396
    %470 = vmatpush.bf16.msra.mxu0 %v392
    %471 = vmatpush.bf16.msra.mxu0 %v388
    %472 = vmatmul.bf16.gmra.mxu0 0
    %v473 = vpop.f32.mrf.mxu0
    %v474 = vadd.f32 0.0, %v473
    %v475 = vpop.f32.mrf.mxu0
    %476 = vdwg.mxu0
    %477 = vmatpush.bf16.msra.mxu0 %v417
    %478 = vmatpush.bf16.msra.mxu0 %v413
    %479 = vmatpush.bf16.msra.mxu0 %v409
    %480 = vmatpush.bf16.msra.mxu0 %v405
    %481 = vmatpush.bf16.msra.mxu0 %v401
    %482 = vmatpush.bf16.msra.mxu0 %v397
    %483 = vmatpush.bf16.msra.mxu0 %v393
    %484 = vmatpush.bf16.msra.mxu0 %v389
    %485 = vmatmul.bf16.gmra.mxu0 0
    %v486 = vpop.f32.mrf.mxu0
    %v487 = vadd.f32 0.0, %v486
    %v488 = vpop.f32.mrf.mxu0
    %489 = vdwg.mxu0
    %490 = vmatpush.bf16.msra.mxu0 %v418
    %491 = vmatpush.bf16.msra.mxu0 %v414
    %492 = vmatpush.bf16.msra.mxu0 %v410
    %493 = vmatpush.bf16.msra.mxu0 %v406
    %494 = vmatpush.bf16.msra.mxu0 %v402
    %495 = vmatpush.bf16.msra.mxu0 %v398
    %496 = vmatpush.bf16.msra.mxu0 %v394
    %497 = vmatpush.bf16.msra.mxu0 %v390
    %498 = vmatmul.bf16.gmra.mxu0 0
    %v499 = vpop.f32.mrf.mxu0
    %v500 = vadd.f32 0.0, %v499
    %v501 = vpop.f32.mrf.mxu0
    %502 = vdwg.mxu0
    %v503 = vadd.f32 %v185, %v461
    %v504 = vadd.f32 %v214, %v474
    %v505 = vadd.f32 %v243, %v487
    %v506 = vadd.f32 %v272, %v500
    %v507 = vxor.u32 %v503, 2147483648
    %v508 = vxor.u32 %v504, 2147483648
    %v509 = vxor.u32 %v505, 2147483648
    %v510 = vmul.f32 %v507, 1.442695
    %v511 = vpow.pop %v510
    %v512 = vmul.f32 %v508, 1.442695
    %v513 = vpow.pop %v512
    %v514 = vmul.f32 %v509, 1.442695
    %v515 = vpow.pop %v514
    %v516 = vadd.f32 %v511, 1.0
    %v517 = vadd.f32 %v513, 1.0
    %v518 = vadd.f32 %v515, 1.0
    %v519 = vrcp.pop %v516
    %v520 = vmul.f32 %v516, %v519
    %v521 = vsub.f32 1.0, %v520
    %v522 = vmul.f32 %v519, %v521
    %v523 = vadd.f32 %v519, %v522
    %vm524 = vweird.f32 %v516
    %vm525 = vweird.f32 %v519
    %vm526 = vmor %vm524, %vm525
    %v527 = vsel %vm526, %v519, %v523
    %v528 = vand.u32 2147483647, %v516
    %vm529 = vcmp.eq.f32.partialorder %v528, 8.507059e+37
    %v530 = vand.u32 %v516, 2147483648
    %v531 = vor.u32 1.1754944e-38, %v530
    %v532 = vsel %vm529, %v531, %v527
    %v533 = vmul.f32 1.0, %v532
    %v534 = vrcp.pop %v517
    %v535 = vmul.f32 %v517, %v534
    %v536 = vsub.f32 1.0, %v535
    %v537 = vmul.f32 %v534, %v536
    %v538 = vadd.f32 %v534, %v537
    %vm539 = vweird.f32 %v517
    %vm540 = vweird.f32 %v534
    %vm541 = vmor %vm539, %vm540
    %v542 = vsel %vm541, %v534, %v538
    %v543 = vand.u32 2147483647, %v517
    %vm544 = vcmp.eq.f32.partialorder %v543, 8.507059e+37
    %v545 = vand.u32 %v517, 2147483648
    %v546 = vor.u32 1.1754944e-38, %v545
    %v547 = vsel %vm544, %v546, %v542
    %v548 = vmul.f32 1.0, %v547
    %v549 = vrcp.pop %v518
    %v550 = vmul.f32 %v518, %v549
    %v551 = vsub.f32 1.0, %v550
    %v552 = vmul.f32 %v549, %v551
    %v553 = vadd.f32 %v549, %v552
    %vm554 = vweird.f32 %v518
    %vm555 = vweird.f32 %v549
    %vm556 = vmor %vm554, %vm555
    %v557 = vsel %vm556, %v549, %v553
    %v558 = vand.u32 2147483647, %v518
    %vm559 = vcmp.eq.f32.partialorder %v558, 8.507059e+37
    %v560 = vand.u32 %v518, 2147483648
    %v561 = vor.u32 1.1754944e-38, %v560
    %v562 = vsel %vm559, %v561, %v557
    %v563 = vmul.f32 1.0, %v562
    %v564 = vtanh.pop %v506
    %v565 = vmul.f32 %v548, 0.0
    %v566 = vmul.f32 %v533, %v564
    %v567 = vadd.f32 %v565, %v566
    %v568 = vtanh.pop %v567
    %v569 = vmul.f32 %v563, %v568
    %v570 = vpack.c.bf16 %v569, %v569
    %571 = vmatpush.bf16.msra.mxu0 %v415
    %572 = vmatpush.bf16.msra.mxu0 %v411
    %573 = vmatpush.bf16.msra.mxu0 %v407
    %574 = vmatpush.bf16.msra.mxu0 %v403
    %575 = vmatpush.bf16.msra.mxu0 %v399
    %576 = vmatpush.bf16.msra.mxu0 %v395
    %577 = vmatpush.bf16.msra.mxu0 %v391
    %578 = vmatpush.bf16.msra.mxu0 %v387
    %579 = vmatmul.bf16.gmra.mxu0 %v570
    %v580 = vpop.f32.mrf.mxu0
    %v581 = vadd.f32 0.0, %v580
    %v582 = vpop.f32.mrf.mxu0
    %583 = vdwg.mxu0
    %584 = vmatpush.bf16.msra.mxu0 %v416
    %585 = vmatpush.bf16.msra.mxu0 %v412
    %586 = vmatpush.bf16.msra.mxu0 %v408
    %587 = vmatpush.bf16.msra.mxu0 %v404
    %588 = vmatpush.bf16.msra.mxu0 %v400
    %589 = vmatpush.bf16.msra.mxu0 %v396
    %590 = vmatpush.bf16.msra.mxu0 %v392
    %591 = vmatpush.bf16.msra.mxu0 %v388
    %592 = vmatmul.bf16.gmra.mxu0 %v570
    %v593 = vpop.f32.mrf.mxu0
    %v594 = vadd.f32 0.0, %v593
    %v595 = vpop.f32.mrf.mxu0
    %596 = vdwg.mxu0
    %597 = vmatpush.bf16.msra.mxu0 %v417
    %598 = vmatpush.bf16.msra.mxu0 %v413
    %599 = vmatpush.bf16.msra.mxu0 %v409
    %600 = vmatpush.bf16.msra.mxu0 %v405
    %601 = vmatpush.bf16.msra.mxu0 %v401
    %602 = vmatpush.bf16.msra.mxu0 %v397
    %603 = vmatpush.bf16.msra.mxu0 %v393
    %604 = vmatpush.bf16.msra.mxu0 %v389
    %605 = vmatmul.bf16.gmra.mxu0 %v570
    %v606 = vpop.f32.mrf.mxu0
    %v607 = vadd.f32 0.0, %v606
    %v608 = vpop.f32.mrf.mxu0
    %609 = vdwg.mxu0
    %610 = vmatpush.bf16.msra.mxu0 %v418
    %611 = vmatpush.bf16.msra.mxu0 %v414
    %612 = vmatpush.bf16.msra.mxu0 %v410
    %613 = vmatpush.bf16.msra.mxu0 %v406
    %614 = vmatpush.bf16.msra.mxu0 %v402
    %615 = vmatpush.bf16.msra.mxu0 %v398
    %616 = vmatpush.bf16.msra.mxu0 %v394
    %617 = vmatpush.bf16.msra.mxu0 %v390
    %618 = vmatmul.bf16.gmra.mxu0 %v570
    %v619 = vpop.f32.mrf.mxu0
    %v620 = vadd.f32 0.0, %v619
    %v621 = vpop.f32.mrf.mxu0
    %622 = vdwg.mxu0
    %v623 = vadd.f32 %v187, %v581
    %v624 = vadd.f32 %v216, %v594
    %v625 = vadd.f32 %v245, %v607
    %v626 = vadd.f32 %v274, %v620
    %v627 = vxor.u32 %v623, 2147483648
    %v628 = vxor.u32 %v624, 2147483648
    %v629 = vxor.u32 %v625, 2147483648
    %v630 = vmul.f32 %v627, 1.442695
    %v631 = vpow.pop %v630
    %v632 = vmul.f32 %v628, 1.442695
    %v633 = vpow.pop %v632
    %v634 = vmul.f32 %v629, 1.442695
    %v635 = vpow.pop %v634
    %v636 = vadd.f32 %v631, 1.0
    %v637 = vadd.f32 %v633, 1.0
    %v638 = vadd.f32 %v635, 1.0
    %v639 = vrcp.pop %v636
    %v640 = vmul.f32 %v636, %v639
    %v641 = vsub.f32 1.0, %v640
    %v642 = vmul.f32 %v639, %v641
    %v643 = vadd.f32 %v639, %v642
    %vm644 = vweird.f32 %v636
    %vm645 = vweird.f32 %v639
    %vm646 = vmor %vm644, %vm645
    %v647 = vsel %vm646, %v639, %v643
    %v648 = vand.u32 2147483647, %v636
    %vm649 = vcmp.eq.f32.partialorder %v648, 8.507059e+37
    %v650 = vand.u32 %v636, 2147483648
    %v651 = vor.u32 1.1754944e-38, %v650
    %v652 = vsel %vm649, %v651, %v647
    %v653 = vmul.f32 1.0, %v652
    %v654 = vrcp.pop %v637
    %v655 = vmul.f32 %v637, %v654
    %v656 = vsub.f32 1.0, %v655
    %v657 = vmul.f32 %v654, %v656
    %v658 = vadd.f32 %v654, %v657
    %vm659 = vweird.f32 %v637
    %vm660 = vweird.f32 %v654
    %vm661 = vmor %vm659, %vm660
    %v662 = vsel %vm661, %v654, %v658
    %v663 = vand.u32 2147483647, %v637
    %vm664 = vcmp.eq.f32.partialorder %v663, 8.507059e+37
    %v665 = vand.u32 %v637, 2147483648
    %v666 = vor.u32 1.1754944e-38, %v665
    %v667 = vsel %vm664, %v666, %v662
    %v668 = vmul.f32 1.0, %v667
    %v669 = vrcp.pop %v638
    %v670 = vmul.f32 %v638, %v669
    %v671 = vsub.f32 1.0, %v670
    %v672 = vmul.f32 %v669, %v671
    %v673 = vadd.f32 %v669, %v672
    %vm674 = vweird.f32 %v638
    %vm675 = vweird.f32 %v669
    %vm676 = vmor %vm674, %vm675
    %v677 = vsel %vm676, %v669, %v673
    %v678 = vand.u32 2147483647, %v638
    %vm679 = vcmp.eq.f32.partialorder %v678, 8.507059e+37
    %v680 = vand.u32 %v638, 2147483648
    %v681 = vor.u32 1.1754944e-38, %v680
    %v682 = vsel %vm679, %v681, %v677
    %v683 = vmul.f32 1.0, %v682
    %v684 = vtanh.pop %v626
    %v685 = vmul.f32 %v668, %v567
    %v686 = vmul.f32 %v653, %v684
    %v687 = vadd.f32 %v685, %v686
    %v688 = vtanh.pop %v687
    %v689 = vmul.f32 %v683, %v688
    %v690 = vpack.c.bf16 %v689, %v689
    %691 = vmatpush.bf16.msra.mxu0 %v415
    %692 = vmatpush.bf16.msra.mxu0 %v411
    %693 = vmatpush.bf16.msra.mxu0 %v407
    %694 = vmatpush.bf16.msra.mxu0 %v403
    %695 = vmatpush.bf16.msra.mxu0 %v399
    %696 = vmatpush.bf16.msra.mxu0 %v395
    %697 = vmatpush.bf16.msra.mxu0 %v391
    %698 = vmatpush.bf16.msra.mxu0 %v387
    %699 = vmatmul.bf16.gmra.mxu0 %v690
    %v700 = vpop.f32.mrf.mxu0
    %v701 = vadd.f32 0.0, %v700
    %v702 = vpop.f32.mrf.mxu0
    %703 = vdwg.mxu0
    %704 = vmatpush.bf16.msra.mxu0 %v416
    %705 = vmatpush.bf16.msra.mxu0 %v412
    %706 = vmatpush.bf16.msra.mxu0 %v408
    %707 = vmatpush.bf16.msra.mxu0 %v404
    %708 = vmatpush.bf16.msra.mxu0 %v400
    %709 = vmatpush.bf16.msra.mxu0 %v396
    %710 = vmatpush.bf16.msra.mxu0 %v392
    %711 = vmatpush.bf16.msra.mxu0 %v388
    %712 = vmatmul.bf16.gmra.mxu0 %v690
    %v713 = vpop.f32.mrf.mxu0
    %v714 = vadd.f32 0.0, %v713
    %v715 = vpop.f32.mrf.mxu0
    %716 = vdwg.mxu0
    %717 = vmatpush.bf16.msra.mxu0 %v417
    %718 = vmatpush.bf16.msra.mxu0 %v413
    %719 = vmatpush.bf16.msra.mxu0 %v409
    %720 = vmatpush.bf16.msra.mxu0 %v405
    %721 = vmatpush.bf16.msra.mxu0 %v401
    %722 = vmatpush.bf16.msra.mxu0 %v397
    %723 = vmatpush.bf16.msra.mxu0 %v393
    %724 = vmatpush.bf16.msra.mxu0 %v389
    %725 = vmatmul.bf16.gmra.mxu0 %v690
    %v726 = vpop.f32.mrf.mxu0
    %v727 = vadd.f32 0.0, %v726
    %v728 = vpop.f32.mrf.mxu0
    %729 = vdwg.mxu0
    %730 = vmatpush.bf16.msra.mxu0 %v418
    %731 = vmatpush.bf16.msra.mxu0 %v414
    %732 = vmatpush.bf16.msra.mxu0 %v410
    %733 = vmatpush.bf16.msra.mxu0 %v406
    %734 = vmatpush.bf16.msra.mxu0 %v402
    %735 = vmatpush.bf16.msra.mxu0 %v398
    %736 = vmatpush.bf16.msra.mxu0 %v394
    %737 = vmatpush.bf16.msra.mxu0 %v390
    %738 = vmatmul.bf16.gmra.mxu0 %v690
    %v739 = vpop.f32.mrf.mxu0
    %v740 = vadd.f32 0.0, %v739
    %v741 = vpop.f32.mrf.mxu0
    %742 = vdwg.mxu0
    %v743 = vadd.f32 %v190, %v701
    %v744 = vadd.f32 %v219, %v714
    %v745 = vadd.f32 %v248, %v727
    %v746 = vadd.f32 %v277, %v740
    %v747 = vxor.u32 %v743, 2147483648
    %v748 = vxor.u32 %v744, 2147483648
    %v749 = vxor.u32 %v745, 2147483648
    %v750 = vmul.f32 %v747, 1.442695
    %v751 = vpow.pop %v750
    %v752 = vmul.f32 %v748, 1.442695
    %v753 = vpow.pop %v752
    %v754 = vmul.f32 %v749, 1.442695
    %v755 = vpow.pop %v754
    %v756 = vadd.f32 %v751, 1.0
    %v757 = vadd.f32 %v753, 1.0
    %v758 = vadd.f32 %v755, 1.0
    %v759 = vrcp.pop %v756
    %v760 = vmul.f32 %v756, %v759
    %v761 = vsub.f32 1.0, %v760
    %v762 = vmul.f32 %v759, %v761
    %v763 = vadd.f32 %v759, %v762
    %vm764 = vweird.f32 %v756
    %vm765 = vweird.f32 %v759
    %vm766 = vmor %vm764, %vm765
    %v767 = vsel %vm766, %v759, %v763
    %v768 = vand.u32 2147483647, %v756
    %vm769 = vcmp.eq.f32.partialorder %v768, 8.507059e+37
    %v770 = vand.u32 %v756, 2147483648
    %v771 = vor.u32 1.1754944e-38, %v770
    %v772 = vsel %vm769, %v771, %v767
    %v773 = vmul.f32 1.0, %v772
    %v774 = vrcp.pop %v757
    %v775 = vmul.f32 %v757, %v774
    %v776 = vsub.f32 1.0, %v775
    %v777 = vmul.f32 %v774, %v776
    %v778 = vadd.f32 %v774, %v777
    %vm779 = vweird.f32 %v757
    %vm780 = vweird.f32 %v774
    %vm781 = vmor %vm779, %vm780
    %v782 = vsel %vm781, %v774, %v778
    %v783 = vand.u32 2147483647, %v757
    %vm784 = vcmp.eq.f32.partialorder %v783, 8.507059e+37
    %v785 = vand.u32 %v757, 2147483648
    %v786 = vor.u32 1.1754944e-38, %v785
    %v787 = vsel %vm784, %v786, %v782
    %v788 = vmul.f32 1.0, %v787
    %v789 = vrcp.pop %v758
    %v790 = vmul.f32 %v758, %v789
    %v791 = vsub.f32 1.0, %v790
    %v792 = vmul.f32 %v789, %v791
    %v793 = vadd.f32 %v789, %v792
    %vm794 = vweird.f32 %v758
    %vm795 = vweird.f32 %v789
    %vm796 = vmor %vm794, %vm795
    %v797 = vsel %vm796, %v789, %v793
    %v798 = vand.u32 2147483647, %v758
    %vm799 = vcmp.eq.f32.partialorder %v798, 8.507059e+37
    %v800 = vand.u32 %v758, 2147483648
    %v801 = vor.u32 1.1754944e-38, %v800
    %v802 = vsel %vm799, %v801, %v797
    %v803 = vmul.f32 1.0, %v802
    %v804 = vtanh.pop %v746
    %v805 = vmul.f32 %v788, %v687
    %v806 = vmul.f32 %v773, %v804
    %v807 = vadd.f32 %v805, %v806
    %v808 = vtanh.pop %v807
    %v809 = vmul.f32 %v803, %v808
    %v810 = vpack.c.bf16 %v809, %v809
    %811 = vmatpush.bf16.msra.mxu0 %v415
    %812 = vmatpush.bf16.msra.mxu0 %v411
    %813 = vmatpush.bf16.msra.mxu0 %v407
    %814 = vmatpush.bf16.msra.mxu0 %v403
    %815 = vmatpush.bf16.msra.mxu0 %v399
    %816 = vmatpush.bf16.msra.mxu0 %v395
    %817 = vmatpush.bf16.msra.mxu0 %v391
    %818 = vmatpush.bf16.msra.mxu0 %v387
    %819 = vmatmul.bf16.gmra.mxu0 %v810
    %v820 = vpop.f32.mrf.mxu0
    %v821 = vadd.f32 0.0, %v820
    %v822 = vpop.f32.mrf.mxu0
    %823 = vdwg.mxu0
    %824 = vmatpush.bf16.msra.mxu0 %v416
    %825 = vmatpush.bf16.msra.mxu0 %v412
    %826 = vmatpush.bf16.msra.mxu0 %v408
    %827 = vmatpush.bf16.msra.mxu0 %v404
    %828 = vmatpush.bf16.msra.mxu0 %v400
    %829 = vmatpush.bf16.msra.mxu0 %v396
    %830 = vmatpush.bf16.msra.mxu0 %v392
    %831 = vmatpush.bf16.msra.mxu0 %v388
    %832 = vmatmul.bf16.gmra.mxu0 %v810
    %v833 = vpop.f32.mrf.mxu0
    %v834 = vadd.f32 0.0, %v833
    %v835 = vpop.f32.mrf.mxu0
    %836 = vdwg.mxu0
    %837 = vmatpush.bf16.msra.mxu0 %v417
    %838 = vmatpush.bf16.msra.mxu0 %v413
    %839 = vmatpush.bf16.msra.mxu0 %v409
    %840 = vmatpush.bf16.msra.mxu0 %v405
    %841 = vmatpush.bf16.msra.mxu0 %v401
    %842 = vmatpush.bf16.msra.mxu0 %v397
    %843 = vmatpush.bf16.msra.mxu0 %v393
    %844 = vmatpush.bf16.msra.mxu0 %v389
    %845 = vmatmul.bf16.gmra.mxu0 %v810
    %v846 = vpop.f32.mrf.mxu0
    %v847 = vadd.f32 0.0, %v846
    %v848 = vpop.f32.mrf.mxu0
    %849 = vdwg.mxu0
    %850 = vmatpush.bf16.msra.mxu0 %v418
    %851 = vmatpush.bf16.msra.mxu0 %v414
    %852 = vmatpush.bf16.msra.mxu0 %v410
    %853 = vmatpush.bf16.msra.mxu0 %v406
    %854 = vmatpush.bf16.msra.mxu0 %v402
    %855 = vmatpush.bf16.msra.mxu0 %v398
    %856 = vmatpush.bf16.msra.mxu0 %v394
    %857 = vmatpush.bf16.msra.mxu0 %v390
    %858 = vmatmul.bf16.gmra.mxu0 %v810
    %v859 = vpop.f32.mrf.mxu0
    %v860 = vadd.f32 0.0, %v859
    %v861 = vpop.f32.mrf.mxu0
    %862 = vdwg.mxu0
    %v863 = vadd.f32 %v192, %v821
    %v864 = vadd.f32 %v221, %v834
    %v865 = vadd.f32 %v250, %v847
    %v866 = vadd.f32 %v279, %v860
    %v867 = vxor.u32 %v863, 2147483648
    %v868 = vxor.u32 %v864, 2147483648
    %v869 = vxor.u32 %v865, 2147483648
    %v870 = vmul.f32 %v867, 1.442695
    %v871 = vpow.pop %v870
    %v872 = vmul.f32 %v868, 1.442695
    %v873 = vpow.pop %v872
    %v874 = vmul.f32 %v869, 1.442695
    %v875 = vpow.pop %v874
    %v876 = vadd.f32 %v871, 1.0
    %v877 = vadd.f32 %v873, 1.0
    %v878 = vadd.f32 %v875, 1.0
    %v879 = vrcp.pop %v876
    %v880 = vmul.f32 %v876, %v879
    %v881 = vsub.f32 1.0, %v880
    %v882 = vmul.f32 %v879, %v881
    %v883 = vadd.f32 %v879, %v882
    %vm884 = vweird.f32 %v876
    %vm885 = vweird.f32 %v879
    %vm886 = vmor %vm884, %vm885
    %v887 = vsel %vm886, %v879, %v883
    %v888 = vand.u32 2147483647, %v876
    %vm889 = vcmp.eq.f32.partialorder %v888, 8.507059e+37
    %v890 = vand.u32 %v876, 2147483648
    %v891 = vor.u32 1.1754944e-38, %v890
    %v892 = vsel %vm889, %v891, %v887
    %v893 = vmul.f32 1.0, %v892
    %v894 = vrcp.pop %v877
    %v895 = vmul.f32 %v877, %v894
    %v896 = vsub.f32 1.0, %v895
    %v897 = vmul.f32 %v894, %v896
    %v898 = vadd.f32 %v894, %v897
    %vm899 = vweird.f32 %v877
    %vm900 = vweird.f32 %v894
    %vm901 = vmor %vm899, %vm900
    %v902 = vsel %vm901, %v894, %v898
    %v903 = vand.u32 2147483647, %v877
    %vm904 = vcmp.eq.f32.partialorder %v903, 8.507059e+37
    %v905 = vand.u32 %v877, 2147483648
    %v906 = vor.u32 1.1754944e-38, %v905
    %v907 = vsel %vm904, %v906, %v902
    %v908 = vmul.f32 1.0, %v907
    %v909 = vrcp.pop %v878
    %v910 = vmul.f32 %v878, %v909
    %v911 = vsub.f32 1.0, %v910
    %v912 = vmul.f32 %v909, %v911
    %v913 = vadd.f32 %v909, %v912
    %vm914 = vweird.f32 %v878
    %vm915 = vweird.f32 %v909
    %vm916 = vmor %vm914, %vm915
    %v917 = vsel %vm916, %v909, %v913
    %v918 = vand.u32 2147483647, %v878
    %vm919 = vcmp.eq.f32.partialorder %v918, 8.507059e+37
    %v920 = vand.u32 %v878, 2147483648
    %v921 = vor.u32 1.1754944e-38, %v920
    %v922 = vsel %vm919, %v921, %v917
    %v923 = vmul.f32 1.0, %v922
    %v924 = vtanh.pop %v866
    %v925 = vmul.f32 %v908, %v807
    %v926 = vmul.f32 %v893, %v924
    %v927 = vadd.f32 %v925, %v926
    %v928 = vtanh.pop %v927
    %v929 = vmul.f32 %v923, %v928
    %v930 = vpack.c.bf16 %v929, %v929
    %931 = vmatpush.bf16.msra.mxu0 %v415
    %932 = vmatpush.bf16.msra.mxu0 %v411
    %933 = vmatpush.bf16.msra.mxu0 %v407
    %934 = vmatpush.bf16.msra.mxu0 %v403
    %935 = vmatpush.bf16.msra.mxu0 %v399
    %936 = vmatpush.bf16.msra.mxu0 %v395
    %937 = vmatpush.bf16.msra.mxu0 %v391
    %938 = vmatpush.bf16.msra.mxu0 %v387
    %939 = vmatmul.bf16.gmra.mxu0 %v930
    %v940 = vpop.f32.mrf.mxu0
    %v941 = vadd.f32 0.0, %v940
    %v942 = vpop.f32.mrf.mxu0
    %943 = vdwg.mxu0
    %944 = vmatpush.bf16.msra.mxu0 %v416
    %945 = vmatpush.bf16.msra.mxu0 %v412
    %946 = vmatpush.bf16.msra.mxu0 %v408
    %947 = vmatpush.bf16.msra.mxu0 %v404
    %948 = vmatpush.bf16.msra.mxu0 %v400
    %949 = vmatpush.bf16.msra.mxu0 %v396
    %950 = vmatpush.bf16.msra.mxu0 %v392
    %951 = vmatpush.bf16.msra.mxu0 %v388
    %952 = vmatmul.bf16.gmra.mxu0 %v930
    %v953 = vpop.f32.mrf.mxu0
    %v954 = vadd.f32 0.0, %v953
    %v955 = vpop.f32.mrf.mxu0
    %956 = vdwg.mxu0
    %957 = vmatpush.bf16.msra.mxu0 %v417
    %958 = vmatpush.bf16.msra.mxu0 %v413
    %959 = vmatpush.bf16.msra.mxu0 %v409
    %960 = vmatpush.bf16.msra.mxu0 %v405
    %961 = vmatpush.bf16.msra.mxu0 %v401
    %962 = vmatpush.bf16.msra.mxu0 %v397
    %963 = vmatpush.bf16.msra.mxu0 %v393
    %964 = vmatpush.bf16.msra.mxu0 %v389
    %965 = vmatmul.bf16.gmra.mxu0 %v930
    %v966 = vpop.f32.mrf.mxu0
    %v967 = vadd.f32 0.0, %v966
    %v968 = vpop.f32.mrf.mxu0
    %969 = vdwg.mxu0
    %970 = vmatpush.bf16.msra.mxu0 %v418
    %971 = vmatpush.bf16.msra.mxu0 %v414
    %972 = vmatpush.bf16.msra.mxu0 %v410
    %973 = vmatpush.bf16.msra.mxu0 %v406
    %974 = vmatpush.bf16.msra.mxu0 %v402
    %975 = vmatpush.bf16.msra.mxu0 %v398
    %976 = vmatpush.bf16.msra.mxu0 %v394
    %977 = vmatpush.bf16.msra.mxu0 %v390
    %978 = vmatmul.bf16.gmra.mxu0 %v930
    %v979 = vpop.f32.mrf.mxu0
    %v980 = vadd.f32 0.0, %v979
    %v981 = vpop.f32.mrf.mxu0
    %982 = vdwg.mxu0
    %v983 = vadd.f32 %v195, %v941
    %v984 = vadd.f32 %v224, %v954
    %v985 = vadd.f32 %v253, %v967
    %v986 = vadd.f32 %v282, %v980
    %v987 = vxor.u32 %v983, 2147483648
    %v988 = vxor.u32 %v984, 2147483648
    %v989 = vxor.u32 %v985, 2147483648
    %v990 = vmul.f32 %v987, 1.442695
    %v991 = vpow.pop %v990
    %v992 = vmul.f32 %v988, 1.442695
    %v993 = vpow.pop %v992
    %v994 = vmul.f32 %v989, 1.442695
    %v995 = vpow.pop %v994
    %v996 = vadd.f32 %v991, 1.0
    %v997 = vadd.f32 %v993, 1.0
    %v998 = vadd.f32 %v995, 1.0
    %v999 = vrcp.pop %v996
    %v1000 = vmul.f32 %v996, %v999
    %v1001 = vsub.f32 1.0, %v1000
    %v1002 = vmul.f32 %v999, %v1001
    %v1003 = vadd.f32 %v999, %v1002
    %vm1004 = vweird.f32 %v996
    %vm1005 = vweird.f32 %v999
    %vm1006 = vmor %vm1004, %vm1005
    %v1007 = vsel %vm1006, %v999, %v1003
    %v1008 = vand.u32 2147483647, %v996
    %vm1009 = vcmp.eq.f32.partialorder %v1008, 8.507059e+37
    %v1010 = vand.u32 %v996, 2147483648
    %v1011 = vor.u32 1.1754944e-38, %v1010
    %v1012 = vsel %vm1009, %v1011, %v1007
    %v1013 = vmul.f32 1.0, %v1012
    %v1014 = vrcp.pop %v997
    %v1015 = vmul.f32 %v997, %v1014
    %v1016 = vsub.f32 1.0, %v1015
    %v1017 = vmul.f32 %v1014, %v1016
    %v1018 = vadd.f32 %v1014, %v1017
    %vm1019 = vweird.f32 %v997
    %vm1020 = vweird.f32 %v1014
    %vm1021 = vmor %vm1019, %vm1020
    %v1022 = vsel %vm1021, %v1014, %v1018
    %v1023 = vand.u32 2147483647, %v997
    %vm1024 = vcmp.eq.f32.partialorder %v1023, 8.507059e+37
    %v1025 = vand.u32 %v997, 2147483648
    %v1026 = vor.u32 1.1754944e-38, %v1025
    %v1027 = vsel %vm1024, %v1026, %v1022
    %v1028 = vmul.f32 1.0, %v1027
    %v1029 = vrcp.pop %v998
    %v1030 = vmul.f32 %v998, %v1029
    %v1031 = vsub.f32 1.0, %v1030
    %v1032 = vmul.f32 %v1029, %v1031
    %v1033 = vadd.f32 %v1029, %v1032
    %vm1034 = vweird.f32 %v998
    %vm1035 = vweird.f32 %v1029
    %vm1036 = vmor %vm1034, %vm1035
    %v1037 = vsel %vm1036, %v1029, %v1033
    %v1038 = vand.u32 2147483647, %v998
    %vm1039 = vcmp.eq.f32.partialorder %v1038, 8.507059e+37
    %v1040 = vand.u32 %v998, 2147483648
    %v1041 = vor.u32 1.1754944e-38, %v1040
    %v1042 = vsel %vm1039, %v1041, %v1037
    %v1043 = vmul.f32 1.0, %v1042
    %v1044 = vtanh.pop %v986
    %v1045 = vmul.f32 %v1028, %v927
    %v1046 = vmul.f32 %v1013, %v1044
    %v1047 = vadd.f32 %v1045, %v1046
    %v1048 = vtanh.pop %v1047
    %v1049 = vmul.f32 %v1043, %v1048
    %v1050 = vpack.c.bf16 %v1049, %v1049
    %1051 = vmatpush.bf16.msra.mxu0 %v415
    %1052 = vmatpush.bf16.msra.mxu0 %v411
    %1053 = vmatpush.bf16.msra.mxu0 %v407
    %1054 = vmatpush.bf16.msra.mxu0 %v403
    %1055 = vmatpush.bf16.msra.mxu0 %v399
    %1056 = vmatpush.bf16.msra.mxu0 %v395
    %1057 = vmatpush.bf16.msra.mxu0 %v391
    %1058 = vmatpush.bf16.msra.mxu0 %v387
    %1059 = vmatmul.bf16.gmra.mxu0 %v1050
    %v1060 = vpop.f32.mrf.mxu0
    %v1061 = vadd.f32 0.0, %v1060
    %v1062 = vpop.f32.mrf.mxu0
    %1063 = vdwg.mxu0
    %1064 = vmatpush.bf16.msra.mxu0 %v416
    %1065 = vmatpush.bf16.msra.mxu0 %v412
    %1066 = vmatpush.bf16.msra.mxu0 %v408
    %1067 = vmatpush.bf16.msra.mxu0 %v404
    %1068 = vmatpush.bf16.msra.mxu0 %v400
    %1069 = vmatpush.bf16.msra.mxu0 %v396
    %1070 = vmatpush.bf16.msra.mxu0 %v392
    %1071 = vmatpush.bf16.msra.mxu0 %v388
    %1072 = vmatmul.bf16.gmra.mxu0 %v1050
    %v1073 = vpop.f32.mrf.mxu0
    %v1074 = vadd.f32 0.0, %v1073
    %v1075 = vpop.f32.mrf.mxu0
    %1076 = vdwg.mxu0
    %1077 = vmatpush.bf16.msra.mxu0 %v417
    %1078 = vmatpush.bf16.msra.mxu0 %v413
    %1079 = vmatpush.bf16.msra.mxu0 %v409
    %1080 = vmatpush.bf16.msra.mxu0 %v405
    %1081 = vmatpush.bf16.msra.mxu0 %v401
    %1082 = vmatpush.bf16.msra.mxu0 %v397
    %1083 = vmatpush.bf16.msra.mxu0 %v393
    %1084 = vmatpush.bf16.msra.mxu0 %v389
    %1085 = vmatmul.bf16.gmra.mxu0 %v1050
    %v1086 = vpop.f32.mrf.mxu0
    %v1087 = vadd.f32 0.0, %v1086
    %v1088 = vpop.f32.mrf.mxu0
    %1089 = vdwg.mxu0
    %1090 = vmatpush.bf16.msra.mxu0 %v418
    %1091 = vmatpush.bf16.msra.mxu0 %v414
    %1092 = vmatpush.bf16.msra.mxu0 %v410
    %1093 = vmatpush.bf16.msra.mxu0 %v406
    %1094 = vmatpush.bf16.msra.mxu0 %v402
    %1095 = vmatpush.bf16.msra.mxu0 %v398
    %1096 = vmatpush.bf16.msra.mxu0 %v394
    %1097 = vmatpush.bf16.msra.mxu0 %v390
    %1098 = vmatmul.bf16.gmra.mxu0 %v1050
    %v1099 = vpop.f32.mrf.mxu0
    %v1100 = vadd.f32 0.0, %v1099
    %v1101 = vpop.f32.mrf.mxu0
    %1102 = vdwg.mxu0
    %v1103 = vadd.f32 %v197, %v1061
    %v1104 = vadd.f32 %v226, %v1074
    %v1105 = vadd.f32 %v255, %v1087
    %v1106 = vadd.f32 %v284, %v1100
    %v1107 = vxor.u32 %v1103, 2147483648
    %v1108 = vxor.u32 %v1104, 2147483648
    %v1109 = vxor.u32 %v1105, 2147483648
    %v1110 = vmul.f32 %v1107, 1.442695
    %v1111 = vpow.pop %v1110
    %v1112 = vmul.f32 %v1108, 1.442695
    %v1113 = vpow.pop %v1112
    %v1114 = vmul.f32 %v1109, 1.442695
    %v1115 = vpow.pop %v1114
    %v1116 = vadd.f32 %v1111, 1.0
    %v1117 = vadd.f32 %v1113, 1.0
    %v1118 = vadd.f32 %v1115, 1.0
    %v1119 = vrcp.pop %v1116
    %v1120 = vmul.f32 %v1116, %v1119
    %v1121 = vsub.f32 1.0, %v1120
    %v1122 = vmul.f32 %v1119, %v1121
    %v1123 = vadd.f32 %v1119, %v1122
    %vm1124 = vweird.f32 %v1116
    %vm1125 = vweird.f32 %v1119
    %vm1126 = vmor %vm1124, %vm1125
    %v1127 = vsel %vm1126, %v1119, %v1123
    %v1128 = vand.u32 2147483647, %v1116
    %vm1129 = vcmp.eq.f32.partialorder %v1128, 8.507059e+37
    %v1130 = vand.u32 %v1116, 2147483648
    %v1131 = vor.u32 1.1754944e-38, %v1130
    %v1132 = vsel %vm1129, %v1131, %v1127
    %v1133 = vmul.f32 1.0, %v1132
    %v1134 = vrcp.pop %v1117
    %v1135 = vmul.f32 %v1117, %v1134
    %v1136 = vsub.f32 1.0, %v1135
    %v1137 = vmul.f32 %v1134, %v1136
    %v1138 = vadd.f32 %v1134, %v1137
    %vm1139 = vweird.f32 %v1117
    %vm1140 = vweird.f32 %v1134
    %vm1141 = vmor %vm1139, %vm1140
    %v1142 = vsel %vm1141, %v1134, %v1138
    %v1143 = vand.u32 2147483647, %v1117
    %vm1144 = vcmp.eq.f32.partialorder %v1143, 8.507059e+37
    %v1145 = vand.u32 %v1117, 2147483648
    %v1146 = vor.u32 1.1754944e-38, %v1145
    %v1147 = vsel %vm1144, %v1146, %v1142
    %v1148 = vmul.f32 1.0, %v1147
    %v1149 = vrcp.pop %v1118
    %v1150 = vmul.f32 %v1118, %v1149
    %v1151 = vsub.f32 1.0, %v1150
    %v1152 = vmul.f32 %v1149, %v1151
    %v1153 = vadd.f32 %v1149, %v1152
    %vm1154 = vweird.f32 %v1118
    %vm1155 = vweird.f32 %v1149
    %vm1156 = vmor %vm1154, %vm1155
    %v1157 = vsel %vm1156, %v1149, %v1153
    %v1158 = vand.u32 2147483647, %v1118
    %vm1159 = vcmp.eq.f32.partialorder %v1158, 8.507059e+37
    %v1160 = vand.u32 %v1118, 2147483648
    %v1161 = vor.u32 1.1754944e-38, %v1160
    %v1162 = vsel %vm1159, %v1161, %v1157
    %v1163 = vmul.f32 1.0, %v1162
    %v1164 = vtanh.pop %v1106
    %v1165 = vmul.f32 %v1148, %v1047
    %v1166 = vmul.f32 %v1133, %v1164
    %v1167 = vadd.f32 %v1165, %v1166
    %v1168 = vtanh.pop %v1167
    %v1169 = vmul.f32 %v1163, %v1168
    %v1170 = vpack.c.bf16 %v1169, %v1169
    %1171 = vmatpush.bf16.msra.mxu0 %v415
    %1172 = vmatpush.bf16.msra.mxu0 %v411
    %1173 = vmatpush.bf16.msra.mxu0 %v407
    %1174 = vmatpush.bf16.msra.mxu0 %v403
    %1175 = vmatpush.bf16.msra.mxu0 %v399
    %1176 = vmatpush.bf16.msra.mxu0 %v395
    %1177 = vmatpush.bf16.msra.mxu0 %v391
    %1178 = vmatpush.bf16.msra.mxu0 %v387
    %1179 = vmatmul.bf16.gmra.mxu0 %v1170
    %v1180 = vpop.f32.mrf.mxu0
    %v1181 = vadd.f32 0.0, %v1180
    %v1182 = vpop.f32.mrf.mxu0
    %1183 = vdwg.mxu0
    %1184 = vmatpush.bf16.msra.mxu0 %v416
    %1185 = vmatpush.bf16.msra.mxu0 %v412
    %1186 = vmatpush.bf16.msra.mxu0 %v408
    %1187 = vmatpush.bf16.msra.mxu0 %v404
    %1188 = vmatpush.bf16.msra.mxu0 %v400
    %1189 = vmatpush.bf16.msra.mxu0 %v396
    %1190 = vmatpush.bf16.msra.mxu0 %v392
    %1191 = vmatpush.bf16.msra.mxu0 %v388
    %1192 = vmatmul.bf16.gmra.mxu0 %v1170
    %v1193 = vpop.f32.mrf.mxu0
    %v1194 = vadd.f32 0.0, %v1193
    %v1195 = vpop.f32.mrf.mxu0
    %1196 = vdwg.mxu0
    %1197 = vmatpush.bf16.msra.mxu0 %v417
    %1198 = vmatpush.bf16.msra.mxu0 %v413
    %1199 = vmatpush.bf16.msra.mxu0 %v409
    %1200 = vmatpush.bf16.msra.mxu0 %v405
    %1201 = vmatpush.bf16.msra.mxu0 %v401
    %1202 = vmatpush.bf16.msra.mxu0 %v397
    %1203 = vmatpush.bf16.msra.mxu0 %v393
    %1204 = vmatpush.bf16.msra.mxu0 %v389
    %1205 = vmatmul.bf16.gmra.mxu0 %v1170
    %v1206 = vpop.f32.mrf.mxu0
    %v1207 = vadd.f32 0.0, %v1206
    %v1208 = vpop.f32.mrf.mxu0
    %1209 = vdwg.mxu0
    %1210 = vmatpush.bf16.msra.mxu0 %v418
    %1211 = vmatpush.bf16.msra.mxu0 %v414
    %1212 = vmatpush.bf16.msra.mxu0 %v410
    %1213 = vmatpush.bf16.msra.mxu0 %v406
    %1214 = vmatpush.bf16.msra.mxu0 %v402
    %1215 = vmatpush.bf16.msra.mxu0 %v398
    %1216 = vmatpush.bf16.msra.mxu0 %v394
    %1217 = vmatpush.bf16.msra.mxu0 %v390
    %1218 = vmatmul.bf16.gmra.mxu0 %v1170
    %v1219 = vpop.f32.mrf.mxu0
    %v1220 = vadd.f32 0.0, %v1219
    %v1221 = vpop.f32.mrf.mxu0
    %1222 = vdwg.mxu0
    %v1223 = vadd.f32 %v200, %v1181
    %v1224 = vadd.f32 %v229, %v1194
    %v1225 = vadd.f32 %v258, %v1207
    %v1226 = vadd.f32 %v287, %v1220
    %v1227 = vxor.u32 %v1223, 2147483648
    %v1228 = vxor.u32 %v1224, 2147483648
    %v1229 = vxor.u32 %v1225, 2147483648
    %v1230 = vmul.f32 %v1227, 1.442695
    %v1231 = vpow.pop %v1230
    %v1232 = vmul.f32 %v1228, 1.442695
    %v1233 = vpow.pop %v1232
    %v1234 = vmul.f32 %v1229, 1.442695
    %v1235 = vpow.pop %v1234
    %v1236 = vadd.f32 %v1231, 1.0
    %v1237 = vadd.f32 %v1233, 1.0
    %v1238 = vadd.f32 %v1235, 1.0
    %v1239 = vrcp.pop %v1236
    %v1240 = vmul.f32 %v1236, %v1239
    %v1241 = vsub.f32 1.0, %v1240
    %v1242 = vmul.f32 %v1239, %v1241
    %v1243 = vadd.f32 %v1239, %v1242
    %vm1244 = vweird.f32 %v1236
    %vm1245 = vweird.f32 %v1239
    %vm1246 = vmor %vm1244, %vm1245
    %v1247 = vsel %vm1246, %v1239, %v1243
    %v1248 = vand.u32 2147483647, %v1236
    %vm1249 = vcmp.eq.f32.partialorder %v1248, 8.507059e+37
    %v1250 = vand.u32 %v1236, 2147483648
    %v1251 = vor.u32 1.1754944e-38, %v1250
    %v1252 = vsel %vm1249, %v1251, %v1247
    %v1253 = vmul.f32 1.0, %v1252
    %v1254 = vrcp.pop %v1237
    %v1255 = vmul.f32 %v1237, %v1254
    %v1256 = vsub.f32 1.0, %v1255
    %v1257 = vmul.f32 %v1254, %v1256
    %v1258 = vadd.f32 %v1254, %v1257
    %vm1259 = vweird.f32 %v1237
    %vm1260 = vweird.f32 %v1254
    %vm1261 = vmor %vm1259, %vm1260
    %v1262 = vsel %vm1261, %v1254, %v1258
    %v1263 = vand.u32 2147483647, %v1237
    %vm1264 = vcmp.eq.f32.partialorder %v1263, 8.507059e+37
    %v1265 = vand.u32 %v1237, 2147483648
    %v1266 = vor.u32 1.1754944e-38, %v1265
    %v1267 = vsel %vm1264, %v1266, %v1262
    %v1268 = vmul.f32 1.0, %v1267
    %v1269 = vrcp.pop %v1238
    %v1270 = vmul.f32 %v1238, %v1269
    %v1271 = vsub.f32 1.0, %v1270
    %v1272 = vmul.f32 %v1269, %v1271
    %v1273 = vadd.f32 %v1269, %v1272
    %vm1274 = vweird.f32 %v1238
    %vm1275 = vweird.f32 %v1269
    %vm1276 = vmor %vm1274, %vm1275
    %v1277 = vsel %vm1276, %v1269, %v1273
    %v1278 = vand.u32 2147483647, %v1238
    %vm1279 = vcmp.eq.f32.partialorder %v1278, 8.507059e+37
    %v1280 = vand.u32 %v1238, 2147483648
    %v1281 = vor.u32 1.1754944e-38, %v1280
    %v1282 = vsel %vm1279, %v1281, %v1277
    %v1283 = vmul.f32 1.0, %v1282
    %v1284 = vtanh.pop %v1226
    %v1285 = vmul.f32 %v1268, %v1167
    %v1286 = vmul.f32 %v1253, %v1284
    %v1287 = vadd.f32 %v1285, %v1286
    %v1288 = vtanh.pop %v1287
    %v1289 = vmul.f32 %v1283, %v1288
    %v1290 = vpack.c.bf16 %v1289, %v1289
    %1291 = vmatpush.bf16.msra.mxu0 %v415
    %1292 = vmatpush.bf16.msra.mxu0 %v411
    %1293 = vmatpush.bf16.msra.mxu0 %v407
    %1294 = vmatpush.bf16.msra.mxu0 %v403
    %1295 = vmatpush.bf16.msra.mxu0 %v399
    %1296 = vmatpush.bf16.msra.mxu0 %v395
    %1297 = vmatpush.bf16.msra.mxu0 %v391
    %1298 = vmatpush.bf16.msra.mxu0 %v387
    %1299 = vmatmul.bf16.gmra.mxu0 %v1290
    %v1300 = vpop.f32.mrf.mxu0
    %v1301 = vadd.f32 0.0, %v1300
    %v1302 = vpop.f32.mrf.mxu0
    %1303 = vdwg.mxu0
    %1304 = vmatpush.bf16.msra.mxu0 %v416
    %1305 = vmatpush.bf16.msra.mxu0 %v412
    %1306 = vmatpush.bf16.msra.mxu0 %v408
    %1307 = vmatpush.bf16.msra.mxu0 %v404
    %1308 = vmatpush.bf16.msra.mxu0 %v400
    %1309 = vmatpush.bf16.msra.mxu0 %v396
    %1310 = vmatpush.bf16.msra.mxu0 %v392
    %1311 = vmatpush.bf16.msra.mxu0 %v388
    %1312 = vmatmul.bf16.gmra.mxu0 %v1290
    %v1313 = vpop.f32.mrf.mxu0
    %v1314 = vadd.f32 0.0, %v1313
    %v1315 = vpop.f32.mrf.mxu0
    %1316 = vdwg.mxu0
    %1317 = vmatpush.bf16.msra.mxu0 %v417
    %1318 = vmatpush.bf16.msra.mxu0 %v413
    %1319 = vmatpush.bf16.msra.mxu0 %v409
    %1320 = vmatpush.bf16.msra.mxu0 %v405
    %1321 = vmatpush.bf16.msra.mxu0 %v401
    %1322 = vmatpush.bf16.msra.mxu0 %v397
    %1323 = vmatpush.bf16.msra.mxu0 %v393
    %1324 = vmatpush.bf16.msra.mxu0 %v389
    %1325 = vmatmul.bf16.gmra.mxu0 %v1290
    %v1326 = vpop.f32.mrf.mxu0
    %v1327 = vadd.f32 0.0, %v1326
    %v1328 = vpop.f32.mrf.mxu0
    %1329 = vdwg.mxu0
    %1330 = vmatpush.bf16.msra.mxu0 %v418
    %1331 = vmatpush.bf16.msra.mxu0 %v414
    %1332 = vmatpush.bf16.msra.mxu0 %v410
    %1333 = vmatpush.bf16.msra.mxu0 %v406
    %1334 = vmatpush.bf16.msra.mxu0 %v402
    %1335 = vmatpush.bf16.msra.mxu0 %v398
    %1336 = vmatpush.bf16.msra.mxu0 %v394
    %1337 = vmatpush.bf16.msra.mxu0 %v390
    %1338 = vmatmul.bf16.gmra.mxu0 %v1290
    %v1339 = vpop.f32.mrf.mxu0
    %v1340 = vadd.f32 0.0, %v1339
    %v1341 = vpop.f32.mrf.mxu0
    %1342 = vdwg.mxu0
    %v1343 = vadd.f32 %v202, %v1301
    %v1344 = vadd.f32 %v231, %v1314
    %v1345 = vadd.f32 %v260, %v1327
    %v1346 = vadd.f32 %v289, %v1340
    %v1347 = vxor.u32 %v1343, 2147483648
    %v1348 = vxor.u32 %v1344, 2147483648
    %v1349 = vxor.u32 %v1345, 2147483648
    %v1350 = vmul.f32 %v1347, 1.442695
    %v1351 = vpow.pop %v1350
    %v1352 = vmul.f32 %v1348, 1.442695
    %v1353 = vpow.pop %v1352
    %v1354 = vmul.f32 %v1349, 1.442695
    %v1355 = vpow.pop %v1354
    %v1356 = vadd.f32 %v1351, 1.0
    %v1357 = vadd.f32 %v1353, 1.0
    %v1358 = vadd.f32 %v1355, 1.0
    %v1359 = vrcp.pop %v1356
    %v1360 = vmul.f32 %v1356, %v1359
    %v1361 = vsub.f32 1.0, %v1360
    %v1362 = vmul.f32 %v1359, %v1361
    %v1363 = vadd.f32 %v1359, %v1362
    %vm1364 = vweird.f32 %v1356
    %vm1365 = vweird.f32 %v1359
    %vm1366 = vmor %vm1364, %vm1365
    %v1367 = vsel %vm1366, %v1359, %v1363
    %v1368 = vand.u32 2147483647, %v1356
    %vm1369 = vcmp.eq.f32.partialorder %v1368, 8.507059e+37
    %v1370 = vand.u32 %v1356, 2147483648
    %v1371 = vor.u32 1.1754944e-38, %v1370
    %v1372 = vsel %vm1369, %v1371, %v1367
    %v1373 = vmul.f32 1.0, %v1372
    %v1374 = vrcp.pop %v1357
    %v1375 = vmul.f32 %v1357, %v1374
    %v1376 = vsub.f32 1.0, %v1375
    %v1377 = vmul.f32 %v1374, %v1376
    %v1378 = vadd.f32 %v1374, %v1377
    %vm1379 = vweird.f32 %v1357
    %vm1380 = vweird.f32 %v1374
    %vm1381 = vmor %vm1379, %vm1380
    %v1382 = vsel %vm1381, %v1374, %v1378
    %v1383 = vand.u32 2147483647, %v1357
    %vm1384 = vcmp.eq.f32.partialorder %v1383, 8.507059e+37
    %v1385 = vand.u32 %v1357, 2147483648
    %v1386 = vor.u32 1.1754944e-38, %v1385
    %v1387 = vsel %vm1384, %v1386, %v1382
    %v1388 = vmul.f32 1.0, %v1387
    %v1389 = vrcp.pop %v1358
    %v1390 = vmul.f32 %v1358, %v1389
    %v1391 = vsub.f32 1.0, %v1390
    %v1392 = vmul.f32 %v1389, %v1391
    %v1393 = vadd.f32 %v1389, %v1392
    %vm1394 = vweird.f32 %v1358
    %vm1395 = vweird.f32 %v1389
    %vm1396 = vmor %vm1394, %vm1395
    %v1397 = vsel %vm1396, %v1389, %v1393
    %v1398 = vand.u32 2147483647, %v1358
    %vm1399 = vcmp.eq.f32.partialorder %v1398, 8.507059e+37
    %v1400 = vand.u32 %v1358, 2147483648
    %v1401 = vor.u32 1.1754944e-38, %v1400
    %v1402 = vsel %vm1399, %v1401, %v1397
    %v1403 = vmul.f32 1.0, %v1402
    %v1404 = vtanh.pop %v1346
    %v1405 = vmul.f32 %v1388, %v1287
    %v1406 = vmul.f32 %v1373, %v1404
    %v1407 = vadd.f32 %v1405, %v1406
    %v1408 = vtanh.pop %v1407
    %v1409 = vmul.f32 %v1403, %v1408
    %v1410 = vtanh.pop %v1409
    %v1411 = vpack.c.bf16 %v1410, %v1410
    %v1412 = vld [vmem:[%s1] sm:$0xff]
    %1414 = vset.pattern.permute.xlu0 0
    %1415 = vperm.xlu0 %1414, %v1412
    %v1416 = vpop.permute.xlu0 %1415
    %v1419 = vperm.slane %v103, 0
    %v1421 = vmul.f32 %v1416, %v1419
    %v1438 = vunpack.c.l.b16 %v70
    %v1439 = vunpack.c.l.b16 %v71
    %v1440 = vunpack.c.l.b16 %v72
    %v1441 = vunpack.c.l.b16 %v73
    %v1442 = vunpack.c.l.b16 %v74
    %v1443 = vunpack.c.l.b16 %v75
    %v1444 = vunpack.c.l.b16 %v76
    %v1445 = vunpack.c.l.b16 %v77
    %v1446 = vunpack.c.l.b16 %v78
    %v1447 = vunpack.c.l.b16 %v79
    %v1448 = vunpack.c.l.b16 %v80
    %v1449 = vunpack.c.l.b16 %v81
    %v1450 = vunpack.c.l.b16 %v82
    %v1451 = vunpack.c.l.b16 %v83
    %v1452 = vunpack.c.l.b16 %v84
    %v1453 = vunpack.c.l.b16 %v85
    %v1454 = vpack.c.b16 %v1439, %v1438
    %v1455 = vpack.c.b16 %v1441, %v1440
    %v1456 = vpack.c.b16 %v1443, %v1442
    %v1457 = vpack.c.b16 %v1445, %v1444
    %v1458 = vpack.c.b16 %v1447, %v1446
    %v1459 = vpack.c.b16 %v1449, %v1448
    %v1460 = vpack.c.b16 %v1451, %v1450
    %v1461 = vpack.c.b16 %v1453, %v1452
    %1470 = vmatpush.bf16.msra.mxu0 %v1461
    %1471 = vmatpush.bf16.msra.mxu0 %v1460
    %1472 = vmatpush.bf16.msra.mxu0 %v1459
    %1473 = vmatpush.bf16.msra.mxu0 %v1458
    %1474 = vmatpush.bf16.msra.mxu0 %v1457
    %1475 = vmatpush.bf16.msra.mxu0 %v1456
    %1476 = vmatpush.bf16.msra.mxu0 %v1455
    %1477 = vmatpush.bf16.msra.mxu0 %v1454
    %1478 = vmatmul.bf16.gmra.mxu0 %v1411
    %v1479 = vpop.f32.mrf.mxu0
    %v1480 = vadd.f32 %v1421, %v1479
    %v1481 = vpop.f32.mrf.mxu0
    %1482 = vdwg.mxu0
    %v1484 = vperm.slane %v104, 0
    %v1486 = vadd.f32 %v1480, %v1484
    %v1487 = vtanh.pop %v1486
    %v1488 = vpack.c.bf16 %v1487, %v1487
    %v1490 = vperm.slane %v105, 0
    %v1508 = vunpack.c.l.b16 %v86
    %v1509 = vunpack.c.l.b16 %v87
    %v1510 = vunpack.c.l.b16 %v88
    %v1511 = vunpack.c.l.b16 %v89
    %v1512 = vunpack.c.l.b16 %v90
    %v1513 = vunpack.c.l.b16 %v91
    %v1514 = vunpack.c.l.b16 %v92
    %v1515 = vunpack.c.l.b16 %v93
    %v1516 = vunpack.c.l.b16 %v94
    %v1517 = vunpack.c.l.b16 %v95
    %v1518 = vunpack.c.l.b16 %v96
    %v1519 = vunpack.c.l.b16 %v97
    %v1520 = vunpack.c.l.b16 %v98
    %v1521 = vunpack.c.l.b16 %v99
    %v1522 = vunpack.c.l.b16 %v100
    %v1523 = vunpack.c.l.b16 %v101
    %v1524 = vpack.c.b16 %v1509, %v1508
    %v1525 = vpack.c.b16 %v1511, %v1510
    %v1526 = vpack.c.b16 %v1513, %v1512
    %v1527 = vpack.c.b16 %v1515, %v1514
    %v1528 = vpack.c.b16 %v1517, %v1516
    %v1529 = vpack.c.b16 %v1519, %v1518
    %v1530 = vpack.c.b16 %v1521, %v1520
    %v1531 = vpack.c.b16 %v1523, %v1522
    %1540 = vmatpush.bf16.msra.mxu0 %v1531
    %1541 = vmatpush.bf16.msra.mxu0 %v1530
    %1542 = vmatpush.bf16.msra.mxu0 %v1529
    %1543 = vmatpush.bf16.msra.mxu0 %v1528
    %1544 = vmatpush.bf16.msra.mxu0 %v1527
    %1545 = vmatpush.bf16.msra.mxu0 %v1526
    %1546 = vmatpush.bf16.msra.mxu0 %v1525
    %1547 = vmatpush.bf16.msra.mxu0 %v1524
    %1548 = vmatmul.bf16.gmra.mxu0 %v1488
    %v1549 = vpop.f32.mrf.mxu0
    %v1550 = vadd.f32 %v1490, %v1549
    %v1551 = vpop.f32.mrf.mxu0
    %1552 = vdwg.mxu0
    %v1553 = vtanh.pop %v1550
    %1554 = vst [vmem:[#allocation5] sm:$0xff] %v1553
    // Predicated region
    $region26: #{tpu_custom_call.1} parent=1 // pred_check
      _
    $region27: #{tpu_custom_call.1} parent=1 // pred_check_branch
      %1556 = sbr.rel (0) target = $region29
    $region28: #{tpu_custom_call.1} parent=1 // pred_region
      %1558 = vsyncadd [#allocation4], 0
      %s1560 = sshll.u32 [#allocation5], 4
      %s1561 = int_to_ptr.vmem [resolvable:$true] %s1560
      %s1562 = sshll.u32 %s5, 4
      %s1563 = int_to_ptr.hbm [resolvable:$true] %s1562
      %1565 = dma.vmem_to_hbm [thread:$0]  %s1561, 128, %s1563, [#allocation4]
    $region29: #{tpu_custom_call.1} parent=1 // pred_fallthru
      _
    // Predicated region
    $region30: #{tpu_custom_call.1} parent=1 // pred_check
      _
    $region31: #{tpu_custom_call.1} parent=1 // pred_check_branch
      %1567 = sbr.rel (0) target = $region33
    $region32: #{tpu_custom_call.1} parent=1 // pred_region
      %1569 = dma.done [#allocation4], 128
    $region33: #{tpu_custom_call.1} parent=1 // pred_fallthru
      _
    %1570 = vsyncpa [#allocation3], 1
    %1571 = vsyncpa [#allocation4], 1

</llo_original>
